<compile_context>
chip_gen: v7x
topology: tpu7x:2x2x1
jax: 0.10.0
libtpu: 0.0.40
codegen_flags: <defaults>
</compile_context>

<pallas_src>
import functools

import jax
import jax.numpy as jnp
import numpy as np
from jax.experimental import pallas as pl
from jax.experimental.pallas import tpu as pltpu

# ---- deterministic "parameters" of the module (from __init__) --------------
H0 = 0.1                 # h0 smoothing strength
SEARCH_WINDOW = 11       # search_window_size
PATCH_SIZE = 5           # patch_size


def _roll_matrix(n, shift):
    """M such that (M @ x)[i] == x[(i - shift) % n] == jnp.roll(x, shift)[i]."""
    idx = (np.arange(n) - shift) % n
    m = np.zeros((n, n), np.float32)
    m[np.arange(n), idx] = 1.0
    return m


def _nlm_kernel(rgb_ref, sh_ref, sw_ref, bh_ref, bw_ref, out_ref,
                num_ref, den_ref, *, n_shifts, inv_h):
    rgb = rgb_ref[0]                      # (C, H, W)
    C = rgb.shape[0]
    y = jnp.mean(rgb, axis=0)             # (H, W) channel mean
    bh = bh_ref[...]                      # (H, H) circulant 5-band (rows)
    bw = bw_ref[...]                      # (W, W) circulant 5-band (cols)

    num_ref[...] = jnp.zeros_like(num_ref)
    den_ref[...] = jnp.zeros_like(den_ref)

    @pl.loop(0, n_shifts)                 # x_shift loop (columns / lane axis)
    def _dx(tx):
        rw = sw_ref[tx]                   # (W, W): right-multiply == roll along W
        # Hoisted: roll y and every rgb channel along W once per dx.
        y_dx = jnp.dot(y, rw, preferred_element_type=jnp.float32)
        rgb_dx = [jnp.dot(rgb[c], rw, preferred_element_type=jnp.float32)
                  for c in range(C)]

        @pl.loop(0, n_shifts)             # y_shift loop (rows / sublane axis)
        def _dy(ty):
            rh = sh_ref[ty]               # (H, H): left-multiply == roll along H
            y_s = jnp.dot(rh, y_dx, preferred_element_type=jnp.float32)
            d2 = (y - y_s) ** 2
            # BoxFilter(5, reduction='sum') with circular wrap == BH @ d2 @ BW.
            box = jnp.dot(bh, jnp.dot(d2, bw, preferred_element_type=jnp.float32),
                          preferred_element_type=jnp.float32)
            box = jnp.maximum(box, 0.0)            # guard sqrt vs fp rounding
            w = jnp.exp(-jnp.sqrt(box) * inv_h)    # (H, W) weights
            den_ref[...] += w
            for c in range(C):                     # tiny static channel loop
                rgb_s = jnp.dot(rh, rgb_dx[c], preferred_element_type=jnp.float32)
                num_ref[c] += w * rgb_s

    # Single reciprocal + broadcast multiply, hoisted out of all loops.
    # (approx=True is viable too, but needs a ~1e-3 tolerance.)
    inv_den = pl.reciprocal(den_ref[...], approx=False)
    out_ref[0] = jnp.clip(num_ref[...] * inv_den[None, :, :], 0.0, 1.0)


def non_local_means(raw_rgb, h0=H0, search_window_size=SEARCH_WINDOW,
                    patch_size=PATCH_SIZE):
    """raw_rgb: (B, C, H, W) float32 in [0, 1]."""
    B, C, H, W = raw_rgb.shape
    rs, rp = search_window_size // 2, patch_size // 2
    S = search_window_size

    # Permutation matrices for every search-window shift (selected dynamically
    # inside the kernel) and the circulant 5-band box-filter matrices.
    sh = np.stack([_roll_matrix(H, t - rs) for t in range(S)])        # (S, H, H)
    sw = np.stack([_roll_matrix(W, t - rs).T for t in range(S)])      # (S, W, W)
    bh = sum(_roll_matrix(H, p) for p in range(-rp, rp + 1))          # (H, H)
    bw = sum(_roll_matrix(W, q) for q in range(-rp, rp + 1))          # (W, W)

    kernel = functools.partial(_nlm_kernel, n_shifts=S,
                               inv_h=float(1.0 / (h0 + 1e-12)))

    return pl.pallas_call(
        kernel,
        out_shape=jax.ShapeDtypeStruct((B, C, H, W), raw_rgb.dtype),
        grid=(B,),
        in_specs=[
            pl.BlockSpec((1, C, H, W), lambda b: (b, 0, 0, 0)),
            pl.BlockSpec((S, H, H), lambda b: (0, 0, 0)),
            pl.BlockSpec((S, W, W), lambda b: (0, 0, 0)),
            pl.BlockSpec((H, H), lambda b: (0, 0)),
            pl.BlockSpec((W, W), lambda b: (0, 0)),
        ],
        out_specs=pl.BlockSpec((1, C, H, W), lambda b: (b, 0, 0, 0)),
        scratch_shapes=[
            pltpu.VMEM((C, H, W), jnp.float32),   # num accumulator
            pltpu.VMEM((H, W), jnp.float32),      # den accumulator
        ],
        compiler_params=pltpu.CompilerParams(
            dimension_semantics=("parallel",)),
    )(raw_rgb, jnp.asarray(sh, jnp.float32), jnp.asarray(sw, jnp.float32),
      jnp.asarray(bh, jnp.float32), jnp.asarray(bw, jnp.float32))


# ---- pure-JAX reference (mirrors the PyTorch module literally) --------------
def nlm_reference(raw_rgb, h0=H0, sws=SEARCH_WINDOW, ps=PATCH_SIZE):
    rs, rp = sws // 2, ps // 2
    y = jnp.mean(raw_rgb, axis=1, keepdims=True)
    shifts = [(dy, dx) for dx in range(-rs, rs + 1) for dy in range(-rs, rs + 1)]
    y_stack = jnp.stack(
        [jnp.roll(y, (dy, dx), axis=(2, 3)) for dy, dx in shifts], axis=-1)
    rgb_stack = jnp.stack(
        [jnp.roll(raw_rgb, (dy, dx), axis=(2, 3)) for dy, dx in shifts], axis=-1)
    d2 = (y[..., None] - y_stack) ** 2
    box = jnp.zeros_like(d2)
    for px in range(-rp, rp + 1):
        for py in range(-rp, rp + 1):
            box = box + jnp.roll(d2, (py, px), axis=(2, 3))
    w = jnp.exp(-jnp.sqrt(box) / (h0 + 1e-12))
    out = (w * rgb_stack).sum(-1) / w.sum(-1)
    return jnp.clip(out, 0.0, 1.0)


if __name__ == "__main__":
    key = jax.random.PRNGKey(0)
    B, C, H, W = 2, 4, 16, 16
    x = jax.random.uniform(key, (B, C, H, W), dtype=jnp.float32)
    # Quantize the test data onto the bf16 grid so the tight 1e-4 check is
    # insensitive to whatever contraction precision the MXU uses for the
    # (exact 0/1) permutation matmuls.
    x = x.astype(jnp.bfloat16).astype(jnp.float32)

    out = jax.block_until_ready(non_local_means(x))
    ref = jax.block_until_ready(nlm_reference(x))

    assert out.shape == (B, C, H, W)
    max_err = float(jnp.max(jnp.abs(out - ref)))
    assert max_err < 1e-4, f"mismatch vs reference, max_err={max_err}"
    print("KERNEL_OK")
</pallas_src>

<mosaic_0001>
module attributes {stable_mosaic.version = 11 : i64} {
  func.func @_nlm_kernel(%arg0: i32, %arg1: memref<1x4x16x16xf32, #tpu.memory_space<vmem>>, %arg2: memref<11x16x16xf32, #tpu.memory_space<vmem>>, %arg3: memref<11x16x16xf32, #tpu.memory_space<vmem>>, %arg4: memref<16x16xf32, #tpu.memory_space<vmem>>, %arg5: memref<16x16xf32, #tpu.memory_space<vmem>>, %arg6: memref<1x4x16x16xf32, #tpu.memory_space<vmem>>, %arg7: memref<4x16x16xf32, #tpu.memory_space<vmem>>, %arg8: memref<16x16xf32, #tpu.memory_space<vmem>>) attributes {dimension_semantics = [#tpu.dimension_semantics<parallel>], iteration_bounds = array<i64: 2>, scalar_prefetch = 0 : i64, scratch_operands = 2 : i64, tpu.core_type = #tpu.core_type<tc>, window_params = [{transform_indices = @transform_0, window_bounds = array<i64: 1, 4, 16, 16>}, {pipeline_mode = #tpu.pipeline_mode<synchronous>, transform_indices = @transform_1, window_bounds = array<i64: 11, 16, 16>}, {pipeline_mode = #tpu.pipeline_mode<synchronous>, transform_indices = @transform_2, window_bounds = array<i64: 11, 16, 16>}, {pipeline_mode = #tpu.pipeline_mode<synchronous>, transform_indices = @transform_3, window_bounds = array<i64: 16, 16>}, {pipeline_mode = #tpu.pipeline_mode<synchronous>, transform_indices = @transform_4, window_bounds = array<i64: 16, 16>}, {transform_indices = @transform_5, window_bounds = array<i64: 1, 4, 16, 16>}]} {
    %c0 = arith.constant 0 : index
    %c0_0 = arith.constant 0 : index
    %c0_1 = arith.constant 0 : index
    %c0_2 = arith.constant 0 : index
    %0 = vector.load %arg1[%c0, %c0_0, %c0_1, %c0_2] : memref<1x4x16x16xf32, #tpu.memory_space<vmem>>, vector<1x4x16x16xf32>
    %1 = vector.shape_cast %0 : vector<1x4x16x16xf32> to vector<4x16x16xf32>
    %cst = arith.constant dense<0.000000e+00> : vector<16x16xf32>
    %2 = vector.multi_reduction <add>, %1, %cst [0] : vector<4x16x16xf32> to vector<16x16xf32>
    %cst_3 = arith.constant 4.000000e+00 : f32
    %3 = vector.broadcast %cst_3 : f32 to vector<16x16xf32>
    %4 = arith.divf %2, %3 : vector<16x16xf32>
    %c0_4 = arith.constant 0 : index
    %c0_5 = arith.constant 0 : index
    %5 = vector.load %arg4[%c0_4, %c0_5] : memref<16x16xf32, #tpu.memory_space<vmem>>, vector<16x16xf32>
    %c0_6 = arith.constant 0 : index
    %c0_7 = arith.constant 0 : index
    %6 = vector.load %arg5[%c0_6, %c0_7] : memref<16x16xf32, #tpu.memory_space<vmem>>, vector<16x16xf32>
    %cst_8 = arith.constant 0.000000e+00 : f32
    %7 = vector.broadcast %cst_8 : f32 to vector<4x16x16xf32>
    %c0_9 = arith.constant 0 : index
    %c0_10 = arith.constant 0 : index
    %c0_11 = arith.constant 0 : index
    %8 = vector.load %arg7[%c0_9, %c0_10, %c0_11] : memref<4x16x16xf32, #tpu.memory_space<vmem>>, vector<4x16x16xf32>
    tpu.vector_store %arg7[%c0_9, %c0_10, %c0_11], %7 {strides = array<i32>} : memref<4x16x16xf32, #tpu.memory_space<vmem>>, vector<4x16x16xf32>,
    %cst_12 = arith.constant 0.000000e+00 : f32
    %9 = vector.broadcast %cst_12 : f32 to vector<16x16xf32>
    %c0_13 = arith.constant 0 : index
    %c0_14 = arith.constant 0 : index
    %10 = vector.load %arg8[%c0_13, %c0_14] : memref<16x16xf32, #tpu.memory_space<vmem>>, vector<16x16xf32>
    tpu.vector_store %arg8[%c0_13, %c0_14], %9 {strides = array<i32>} : memref<16x16xf32, #tpu.memory_space<vmem>>, vector<16x16xf32>,
    %c0_i32 = arith.constant 0 : i32
    %c11_i32 = arith.constant 11 : i32
    %11 = arith.addi %c0_i32, %c11_i32 : i32
    %c1_i32 = arith.constant 1 : i32
    scf.for %arg9 = %c0_i32 to %11 step %c1_i32  : i32 {
      %c1_i32_27 = arith.constant 1 : i32
      %25 = arith.muli %arg9, %c1_i32_27 : i32
      %c0_i32_28 = arith.constant 0 : i32
      %26 = arith.addi %c0_i32_28, %25 : i32
      %27 = arith.index_cast %26 : i32 to index
      %c0_29 = arith.constant 0 : index
      %c0_30 = arith.constant 0 : index
      %28 = vector.load %arg3[%27, %c0_29, %c0_30] : memref<11x16x16xf32, #tpu.memory_space<vmem>>, vector<1x16x16xf32>
      %29 = vector.shape_cast %28 : vector<1x16x16xf32> to vector<16x16xf32>
      %cst_31 = arith.constant dense<0.000000e+00> : vector<16x16xf32>
      %30 = tpu.matmul %4, %29, %cst_31 {dimension_numbers = #tpu.dot_dimension_numbers<[1], [0], [0], [1], [0, 0, 1, 1], [], []>} : vector<16x16xf32>, vector<16x16xf32>, vector<16x16xf32> -> vector<16x16xf32>
      %31 = vector.extract_strided_slice %1 {offsets = [0, 0, 0], sizes = [1, 16, 16], strides = [1, 1, 1]} : vector<4x16x16xf32> to vector<1x16x16xf32>
      %32 = vector.shape_cast %31 : vector<1x16x16xf32> to vector<16x16xf32>
      %cst_32 = arith.constant dense<0.000000e+00> : vector<16x16xf32>
      %33 = tpu.matmul %32, %29, %cst_32 {dimension_numbers = #tpu.dot_dimension_numbers<[1], [0], [0], [1], [0, 0, 1, 1], [], []>} : vector<16x16xf32>, vector<16x16xf32>, vector<16x16xf32> -> vector<16x16xf32>
      %34 = vector.extract_strided_slice %1 {offsets = [1, 0, 0], sizes = [1, 16, 16], strides = [1, 1, 1]} : vector<4x16x16xf32> to vector<1x16x16xf32>
      %35 = vector.shape_cast %34 : vector<1x16x16xf32> to vector<16x16xf32>
      %cst_33 = arith.constant dense<0.000000e+00> : vector<16x16xf32>
      %36 = tpu.matmul %35, %29, %cst_33 {dimension_numbers = #tpu.dot_dimension_numbers<[1], [0], [0], [1], [0, 0, 1, 1], [], []>} : vector<16x16xf32>, vector<16x16xf32>, vector<16x16xf32> -> vector<16x16xf32>
      %37 = vector.extract_strided_slice %1 {offsets = [2, 0, 0], sizes = [1, 16, 16], strides = [1, 1, 1]} : vector<4x16x16xf32> to vector<1x16x16xf32>
      %38 = vector.shape_cast %37 : vector<1x16x16xf32> to vector<16x16xf32>
      %cst_34 = arith.constant dense<0.000000e+00> : vector<16x16xf32>
      %39 = tpu.matmul %38, %29, %cst_34 {dimension_numbers = #tpu.dot_dimension_numbers<[1], [0], [0], [1], [0, 0, 1, 1], [], []>} : vector<16x16xf32>, vector<16x16xf32>, vector<16x16xf32> -> vector<16x16xf32>
      %40 = vector.extract_strided_slice %1 {offsets = [3, 0, 0], sizes = [1, 16, 16], strides = [1, 1, 1]} : vector<4x16x16xf32> to vector<1x16x16xf32>
      %41 = vector.shape_cast %40 : vector<1x16x16xf32> to vector<16x16xf32>
      %cst_35 = arith.constant dense<0.000000e+00> : vector<16x16xf32>
      %42 = tpu.matmul %41, %29, %cst_35 {dimension_numbers = #tpu.dot_dimension_numbers<[1], [0], [0], [1], [0, 0, 1, 1], [], []>} : vector<16x16xf32>, vector<16x16xf32>, vector<16x16xf32> -> vector<16x16xf32>
      %c0_i32_36 = arith.constant 0 : i32
      %c11_i32_37 = arith.constant 11 : i32
      %43 = arith.addi %c0_i32_36, %c11_i32_37 : i32
      %c1_i32_38 = arith.constant 1 : i32
      scf.for %arg10 = %c0_i32_36 to %43 step %c1_i32_38  : i32 {
        %c1_i32_40 = arith.constant 1 : i32
        %44 = arith.muli %arg10, %c1_i32_40 : i32
        %c0_i32_41 = arith.constant 0 : i32
        %45 = arith.addi %c0_i32_41, %44 : i32
        %46 = arith.index_cast %45 : i32 to index
        %c0_42 = arith.constant 0 : index
        %c0_43 = arith.constant 0 : index
        %47 = vector.load %arg2[%46, %c0_42, %c0_43] : memref<11x16x16xf32, #tpu.memory_space<vmem>>, vector<1x16x16xf32>
        %48 = vector.shape_cast %47 : vector<1x16x16xf32> to vector<16x16xf32>
        %cst_44 = arith.constant dense<0.000000e+00> : vector<16x16xf32>
        %49 = tpu.matmul %48, %30, %cst_44 {dimension_numbers = #tpu.dot_dimension_numbers<[1], [0], [0], [1], [0, 0, 1, 1], [], []>} : vector<16x16xf32>, vector<16x16xf32>, vector<16x16xf32> -> vector<16x16xf32>
        %50 = arith.subf %4, %49 : vector<16x16xf32>
        %51 = arith.mulf %50, %50 : vector<16x16xf32>
        %cst_45 = arith.constant dense<0.000000e+00> : vector<16x16xf32>
        %52 = tpu.matmul %51, %6, %cst_45 {dimension_numbers = #tpu.dot_dimension_numbers<[1], [0], [0], [1], [0, 0, 1, 1], [], []>} : vector<16x16xf32>, vector<16x16xf32>, vector<16x16xf32> -> vector<16x16xf32>
        %cst_46 = arith.constant dense<0.000000e+00> : vector<16x16xf32>
        %53 = tpu.matmul %5, %52, %cst_46 {dimension_numbers = #tpu.dot_dimension_numbers<[1], [0], [0], [1], [0, 0, 1, 1], [], []>} : vector<16x16xf32>, vector<16x16xf32>, vector<16x16xf32> -> vector<16x16xf32>
        %cst_47 = arith.constant 0.000000e+00 : f32
        %54 = vector.broadcast %cst_47 : f32 to vector<16x16xf32>
        %55 = arith.maximumf %53, %54 : vector<16x16xf32>
        %56 = math.sqrt %55 : vector<16x16xf32>
        %cst_48 = arith.constant 0.000000e+00 : f32
        %57 = vector.broadcast %cst_48 : f32 to vector<16x16xf32>
        %58 = arith.subf %57, %56 : vector<16x16xf32>
        %cst_49 = arith.constant 1.000000e+01 : f32
        %59 = vector.broadcast %cst_49 : f32 to vector<16x16xf32>
        %60 = arith.mulf %58, %59 : vector<16x16xf32>
        %61 = math.exp %60 : vector<16x16xf32>
        %c0_50 = arith.constant 0 : index
        %c0_51 = arith.constant 0 : index
        %62 = vector.load %arg8[%c0_50, %c0_51] : memref<16x16xf32, #tpu.memory_space<vmem>>, vector<16x16xf32>
        %63 = arith.addf %62, %61 : vector<16x16xf32>
        %c0_52 = arith.constant 0 : index
        %c0_53 = arith.constant 0 : index
        %64 = vector.load %arg8[%c0_52, %c0_53] : memref<16x16xf32, #tpu.memory_space<vmem>>, vector<16x16xf32>
        tpu.vector_store %arg8[%c0_52, %c0_53], %63 {strides = array<i32>} : memref<16x16xf32, #tpu.memory_space<vmem>>, vector<16x16xf32>,
        %cst_54 = arith.constant dense<0.000000e+00> : vector<16x16xf32>
        %65 = tpu.matmul %48, %33, %cst_54 {dimension_numbers = #tpu.dot_dimension_numbers<[1], [0], [0], [1], [0, 0, 1, 1], [], []>} : vector<16x16xf32>, vector<16x16xf32>, vector<16x16xf32> -> vector<16x16xf32>
        %c0_55 = arith.constant 0 : index
        %c0_56 = arith.constant 0 : index
        %c0_57 = arith.constant 0 : index
        %66 = vector.load %arg7[%c0_55, %c0_56, %c0_57] : memref<4x16x16xf32, #tpu.memory_space<vmem>>, vector<1x16x16xf32>
        %67 = vector.shape_cast %66 : vector<1x16x16xf32> to vector<16x16xf32>
        %68 = arith.mulf %61, %65 : vector<16x16xf32>
        %69 = arith.addf %67, %68 : vector<16x16xf32>
        %c0_58 = arith.constant 0 : index
        %c0_59 = arith.constant 0 : index
        %c0_60 = arith.constant 0 : index
        %70 = vector.load %arg7[%c0_58, %c0_59, %c0_60] : memref<4x16x16xf32, #tpu.memory_space<vmem>>, vector<1x16x16xf32>
        %71 = vector.shape_cast %70 : vector<1x16x16xf32> to vector<16x16xf32>
        %72 = vector.shape_cast %69 : vector<16x16xf32> to vector<1x16x16xf32>
        tpu.vector_store %arg7[%c0_58, %c0_59, %c0_60], %72 {strides = array<i32>} : memref<4x16x16xf32, #tpu.memory_space<vmem>>, vector<1x16x16xf32>,
        %cst_61 = arith.constant dense<0.000000e+00> : vector<16x16xf32>
        %73 = tpu.matmul %48, %36, %cst_61 {dimension_numbers = #tpu.dot_dimension_numbers<[1], [0], [0], [1], [0, 0, 1, 1], [], []>} : vector<16x16xf32>, vector<16x16xf32>, vector<16x16xf32> -> vector<16x16xf32>
        %c1 = arith.constant 1 : index
        %c0_62 = arith.constant 0 : index
        %c0_63 = arith.constant 0 : index
        %74 = vector.load %arg7[%c1, %c0_62, %c0_63] : memref<4x16x16xf32, #tpu.memory_space<vmem>>, vector<1x16x16xf32>
        %75 = vector.shape_cast %74 : vector<1x16x16xf32> to vector<16x16xf32>
        %76 = arith.mulf %61, %73 : vector<16x16xf32>
        %77 = arith.addf %75, %76 : vector<16x16xf32>
        %c1_64 = arith.constant 1 : index
        %c0_65 = arith.constant 0 : index
        %c0_66 = arith.constant 0 : index
        %78 = vector.load %arg7[%c1_64, %c0_65, %c0_66] : memref<4x16x16xf32, #tpu.memory_space<vmem>>, vector<1x16x16xf32>
        %79 = vector.shape_cast %78 : vector<1x16x16xf32> to vector<16x16xf32>
        %80 = vector.shape_cast %77 : vector<16x16xf32> to vector<1x16x16xf32>
        tpu.vector_store %arg7[%c1_64, %c0_65, %c0_66], %80 {strides = array<i32>} : memref<4x16x16xf32, #tpu.memory_space<vmem>>, vector<1x16x16xf32>,
        %cst_67 = arith.constant dense<0.000000e+00> : vector<16x16xf32>
        %81 = tpu.matmul %48, %39, %cst_67 {dimension_numbers = #tpu.dot_dimension_numbers<[1], [0], [0], [1], [0, 0, 1, 1], [], []>} : vector<16x16xf32>, vector<16x16xf32>, vector<16x16xf32> -> vector<16x16xf32>
        %c2 = arith.constant 2 : index
        %c0_68 = arith.constant 0 : index
        %c0_69 = arith.constant 0 : index
        %82 = vector.load %arg7[%c2, %c0_68, %c0_69] : memref<4x16x16xf32, #tpu.memory_space<vmem>>, vector<1x16x16xf32>
        %83 = vector.shape_cast %82 : vector<1x16x16xf32> to vector<16x16xf32>
        %84 = arith.mulf %61, %81 : vector<16x16xf32>
        %85 = arith.addf %83, %84 : vector<16x16xf32>
        %c2_70 = arith.constant 2 : index
        %c0_71 = arith.constant 0 : index
        %c0_72 = arith.constant 0 : index
        %86 = vector.load %arg7[%c2_70, %c0_71, %c0_72] : memref<4x16x16xf32, #tpu.memory_space<vmem>>, vector<1x16x16xf32>
        %87 = vector.shape_cast %86 : vector<1x16x16xf32> to vector<16x16xf32>
        %88 = vector.shape_cast %85 : vector<16x16xf32> to vector<1x16x16xf32>
        tpu.vector_store %arg7[%c2_70, %c0_71, %c0_72], %88 {strides = array<i32>} : memref<4x16x16xf32, #tpu.memory_space<vmem>>, vector<1x16x16xf32>,
        %cst_73 = arith.constant dense<0.000000e+00> : vector<16x16xf32>
        %89 = tpu.matmul %48, %42, %cst_73 {dimension_numbers = #tpu.dot_dimension_numbers<[1], [0], [0], [1], [0, 0, 1, 1], [], []>} : vector<16x16xf32>, vector<16x16xf32>, vector<16x16xf32> -> vector<16x16xf32>
        %c3 = arith.constant 3 : index
        %c0_74 = arith.constant 0 : index
        %c0_75 = arith.constant 0 : index
        %90 = vector.load %arg7[%c3, %c0_74, %c0_75] : memref<4x16x16xf32, #tpu.memory_space<vmem>>, vector<1x16x16xf32>
        %91 = vector.shape_cast %90 : vector<1x16x16xf32> to vector<16x16xf32>
        %92 = arith.mulf %61, %89 : vector<16x16xf32>
        %93 = arith.addf %91, %92 : vector<16x16xf32>
        %c3_76 = arith.constant 3 : index
        %c0_77 = arith.constant 0 : index
        %c0_78 = arith.constant 0 : index
        %94 = vector.load %arg7[%c3_76, %c0_77, %c0_78] : memref<4x16x16xf32, #tpu.memory_space<vmem>>, vector<1x16x16xf32>
        %95 = vector.shape_cast %94 : vector<1x16x16xf32> to vector<16x16xf32>
        %96 = vector.shape_cast %93 : vector<16x16xf32> to vector<1x16x16xf32>
        tpu.vector_store %arg7[%c3_76, %c0_77, %c0_78], %96 {strides = array<i32>} : memref<4x16x16xf32, #tpu.memory_space<vmem>>, vector<1x16x16xf32>,
      }
      %c11_i32_39 = arith.constant 11 : i32
    }
    %c11_i32_15 = arith.constant 11 : i32
    %c0_16 = arith.constant 0 : index
    %c0_17 = arith.constant 0 : index
    %12 = vector.load %arg8[%c0_16, %c0_17] : memref<16x16xf32, #tpu.memory_space<vmem>>, vector<16x16xf32>
    %13 = tpu.reciprocal %12 : vector<16x16xf32> -> vector<16x16xf32>
    %c0_18 = arith.constant 0 : index
    %c0_19 = arith.constant 0 : index
    %c0_20 = arith.constant 0 : index
    %14 = vector.load %arg7[%c0_18, %c0_19, %c0_20] : memref<4x16x16xf32, #tpu.memory_space<vmem>>, vector<4x16x16xf32>
    %15 = vector.shape_cast %13 : vector<16x16xf32> to vector<1x16x16xf32>
    %16 = vector.broadcast %15 : vector<1x16x16xf32> to vector<4x16x16xf32>
    %17 = arith.mulf %14, %16 : vector<4x16x16xf32>
    %cst_21 = arith.constant 0.000000e+00 : f32
    %cst_22 = arith.constant 1.000000e+00 : f32
    %18 = vector.broadcast %cst_21 : f32 to vector<4x16x16xf32>
    %19 = arith.maximumf %18, %17 : vector<4x16x16xf32>
    %20 = vector.broadcast %cst_22 : f32 to vector<4x16x16xf32>
    %21 = arith.minimumf %20, %19 : vector<4x16x16xf32>
    %c0_23 = arith.constant 0 : index
    %c0_24 = arith.constant 0 : index
    %c0_25 = arith.constant 0 : index
    %c0_26 = arith.constant 0 : index
    %22 = vector.load %arg6[%c0_23, %c0_24, %c0_25, %c0_26] : memref<1x4x16x16xf32, #tpu.memory_space<vmem>>, vector<1x4x16x16xf32>
    %23 = vector.shape_cast %22 : vector<1x4x16x16xf32> to vector<4x16x16xf32>
    %24 = vector.shape_cast %21 : vector<4x16x16xf32> to vector<1x4x16x16xf32>
    tpu.vector_store %arg6[%c0_23, %c0_24, %c0_25, %c0_26], %24 {strides = array<i32>} : memref<1x4x16x16xf32, #tpu.memory_space<vmem>>, vector<1x4x16x16xf32>,
    return
  }
  func.func @transform_0(%arg0: i32) -> (i32, i32, i32, i32) {
    %c0_i32 = arith.constant 0 : i32
    %c0_i32_0 = arith.constant 0 : i32
    %c0_i32_1 = arith.constant 0 : i32
    %c0_i32_2 = arith.constant 0 : i32
    return %arg0, %c0_i32, %c0_i32_0, %c0_i32_1 : i32, i32, i32, i32
  }
  func.func @transform_1(%arg0: i32) -> (i32, i32, i32) {
    %c0_i32 = arith.constant 0 : i32
    %c0_i32_0 = arith.constant 0 : i32
    %c0_i32_1 = arith.constant 0 : i32
    %c0_i32_2 = arith.constant 0 : i32
    return %c0_i32, %c0_i32_0, %c0_i32_1 : i32, i32, i32
  }
  func.func @transform_2(%arg0: i32) -> (i32, i32, i32) {
    %c0_i32 = arith.constant 0 : i32
    %c0_i32_0 = arith.constant 0 : i32
    %c0_i32_1 = arith.constant 0 : i32
    %c0_i32_2 = arith.constant 0 : i32
    return %c0_i32, %c0_i32_0, %c0_i32_1 : i32, i32, i32
  }
  func.func @transform_3(%arg0: i32) -> (i32, i32) {
    %c0_i32 = arith.constant 0 : i32
    %c0_i32_0 = arith.constant 0 : i32
    %c0_i32_1 = arith.constant 0 : i32
    return %c0_i32, %c0_i32_0 : i32, i32
  }
  func.func @transform_4(%arg0: i32) -> (i32, i32) {
    %c0_i32 = arith.constant 0 : i32
    %c0_i32_0 = arith.constant 0 : i32
    %c0_i32_1 = arith.constant 0 : i32
    return %c0_i32, %c0_i32_0 : i32, i32
  }
  func.func @transform_5(%arg0: i32) -> (i32, i32, i32, i32) {
    %c0_i32 = arith.constant 0 : i32
    %c0_i32_0 = arith.constant 0 : i32
    %c0_i32_1 = arith.constant 0 : i32
    %c0_i32_2 = arith.constant 0 : i32
    return %arg0, %c0_i32, %c0_i32_0, %c0_i32_1 : i32, i32, i32, i32
  }
}

</mosaic_0001>

<llo_original>
// kernel: tpu_custom_call.1
$region0: #{tpu_custom_call.1}
  #allocation0 [shape = 'u32[]', space=smem, size = 0x4, offset = 0x4, fixed_abs, tag = 'smem constant byte address 0x4 - core index']
  #allocation1 [shape = 'u32[144,128]{1,0:T(1,128)}', space=vmem, size = 0x12000, scoped, tag = 'internal scratch']
  #allocation2 [shape = 'f32[4,16,16]{2,1,0:T(8,128)}', space=vmem, size = 0x8000, scoped, tag = 'scratch operand']
  #allocation3 [shape = 'f32[16,16]{1,0:T(8,128)}', space=vmem, size = 0x2000, scoped, tag = 'scratch operand']
  %s0 = inlined_call_operand.hbm [shape: f32[2,4,16,16], index: 0, kind: input, shape index: {}]
  %s1 = inlined_call_operand.hbm [shape: f32[11,16,16], index: 1, kind: input, shape index: {}]
  %s2 = inlined_call_operand.hbm [shape: f32[11,16,16], index: 2, kind: input, shape index: {}]
  %s3 = inlined_call_operand.hbm [shape: f32[16,16], index: 3, kind: input, shape index: {}]
  %s4 = inlined_call_operand.hbm [shape: f32[16,16], index: 4, kind: input, shape index: {}]
  %s5 = inlined_call_operand.hbm [shape: f32[2,4,16,16], index: 5, kind: output, shape index: {}]
  %s6 = sld [smem:[#allocation0]]
  $region87: #{tpu_custom_call.1} parent=0
    _
  %s8 = ssub.s32 1, %s6
  %s9 = scalar_select 0, %s8, %s6
  $region1: #{tpu_custom_call.1} parent=0
    #allocation4 [shape = 'u8[65536]{0}', space=vmem, size = 0x10000, scoped, tag = 'input window, operand 0']
    #allocation5 [shape = 's32[2]{0}', space=sflag, size = 0x8, scoped, tag = 'scoped memory for tpu_custom_call.1']
    #allocation6 [shape = 's32[2]{0}', space=sflag, size = 0x8, scoped, tag = 'scoped memory for tpu_custom_call.1']
    #allocation7 [shape = 'u8[90112]{0}', space=vmem, size = 0x16000, scoped, tag = 'input window, operand 1, single buffered']
    #allocation8 [shape = 's32[1]{0}', space=sflag, size = 0x4, scoped, tag = 'scoped memory for tpu_custom_call.1']
    #allocation9 [shape = 'u8[90112]{0}', space=vmem, size = 0x16000, scoped, tag = 'input window, operand 2, single buffered']
    #allocation10 [shape = 'u8[8192]{0}', space=vmem, size = 0x2000, scoped, tag = 'input window, operand 3, single buffered']
    #allocation11 [shape = 's32[1]{0}', space=sflag, size = 0x4, scoped, tag = 'scoped memory for tpu_custom_call.1']
    #allocation12 [shape = 'u8[8192]{0}', space=vmem, size = 0x2000, scoped, tag = 'input window, operand 4, single buffered']
    #allocation13 [shape = 'u8[65536]{0}', space=vmem, size = 0x10000, scoped, tag = 'output window, operand 0']
    %10 = vsyncpa [#allocation5], 0
    %s11 = scalar_lea.sflag [#allocation5], 1
    %12 = vsyncpa %s11, 0
    %13 = vsyncpa [#allocation8], 0
    %14 = vsyncpa [#allocation11], 0
    %15 = vsyncpa [#allocation6], 0
    %s16 = scalar_lea.sflag [#allocation6], 1
    %17 = vsyncpa %s16, 0
    loop: start=0, step=1, limit=4
    $region2: #{tpu_custom_call.1} parent=1 // loop_pre_header
      _
    $region3: #{tpu_custom_call.1} parent=1 // loop_header
      %s19 = sphi 0, %s23
      %p20 = scmp.ge.s32.totalorder %s19, 4
      %s29 = sphi 0, %s31
      %s32 = sphi 0, %s29
      %s33 = sphi 0, %s32
      %s49 = sphi 0, %s33
      %s53 = sphi 0, %s53
      %s55 = sphi 0, %s53
      %s56 = sphi 0, %s55
      %s70 = sphi 0, %s56
      %s74 = sphi 0, %s74
      %s76 = sphi 0, %s74
      %s77 = sphi 0, %s76
      %s91 = sphi 0, %s77
      %s95 = sphi 0, %s95
      %s97 = sphi 0, %s95
      %s98 = sphi 0, %s97
      %s112 = sphi 0, %s98
      %s116 = sphi 0, %s116
      %s118 = sphi 0, %s116
      %s119 = sphi 0, %s118
      %s133 = sphi 0, %s119
      %s139 = sphi 0, %s141
      %s142 = sphi 0, %s139
      %s143 = sphi 0, %s142
      %s159 = sphi 0, %s143
    $region4: #{tpu_custom_call.1} parent=1 // loop_header_branch
      %22 = sbr.rel (%p20) target = $region8
    $region5: #{tpu_custom_call.1} parent=1 // loop_body
      %s24 = ssub.s32 %s19, 1
      %s25 = ssub.s32 %s19, 2
      %s26 = sadd.s32 %s19, 1
      %s27 = ssub.s32 %s19, %s26
      %p28 = scmp.eq.s32.totalorder %s27, 0
      %s30 = sadd.s32 %s29, 1
      %s31 = scalar_select %p28, %s29, %s30
      %p34 = pneg %p28
      %p35 = scmp.eq.s32.totalorder %s19, 1
      %p36 = por %p34, %p35
      %p37 = scmp.ne.s32.totalorder %s29, %s32
      %p38 = scmp.eq.s32.totalorder %s19, 0
      %p39 = por %p37, %p38
      %p40 = scmp.ne.s32.totalorder %s29, %s32
      %p41 = scmp.eq.s32.totalorder %s24, 1
      %p42 = por %p40, %p41
      %p43 = scmp.ne.s32.totalorder %s32, %s33
      %p44 = scmp.eq.s32.totalorder %s24, 0
      %p45 = por %p43, %p44
      %p46 = scmp.ne.s32.totalorder %s32, %s33
      %p47 = scmp.eq.s32.totalorder %s25, 1
      %p48 = por %p46, %p47
      %p50 = scmp.ne.s32.totalorder %s33, %s49
      %p51 = scmp.eq.s32.totalorder %s25, 0
      %p52 = por %p50, %p51
      %s54 = sadd.s32 %s53, 1
      %p57 = scmp.eq.s32.totalorder %s19, 1
      %p58 = scmp.ne.s32.totalorder %s53, %s55
      %p59 = scmp.eq.s32.totalorder %s19, 0
      %p60 = por %p58, %p59
      %p61 = scmp.ne.s32.totalorder %s53, %s55
      %p62 = scmp.eq.s32.totalorder %s24, 1
      %p63 = por %p61, %p62
      %p64 = scmp.ne.s32.totalorder %s55, %s56
      %p65 = scmp.eq.s32.totalorder %s24, 0
      %p66 = por %p64, %p65
      %p67 = scmp.ne.s32.totalorder %s55, %s56
      %p68 = scmp.eq.s32.totalorder %s25, 1
      %p69 = por %p67, %p68
      %p71 = scmp.ne.s32.totalorder %s56, %s70
      %p72 = scmp.eq.s32.totalorder %s25, 0
      %p73 = por %p71, %p72
      %s75 = sadd.s32 %s74, 1
      %p78 = scmp.eq.s32.totalorder %s19, 1
      %p79 = scmp.ne.s32.totalorder %s74, %s76
      %p80 = scmp.eq.s32.totalorder %s19, 0
      %p81 = por %p79, %p80
      %p82 = scmp.ne.s32.totalorder %s74, %s76
      %p83 = scmp.eq.s32.totalorder %s24, 1
      %p84 = por %p82, %p83
      %p85 = scmp.ne.s32.totalorder %s76, %s77
      %p86 = scmp.eq.s32.totalorder %s24, 0
      %p87 = por %p85, %p86
      %p88 = scmp.ne.s32.totalorder %s76, %s77
      %p89 = scmp.eq.s32.totalorder %s25, 1
      %p90 = por %p88, %p89
      %p92 = scmp.ne.s32.totalorder %s77, %s91
      %p93 = scmp.eq.s32.totalorder %s25, 0
      %p94 = por %p92, %p93
      %s96 = sadd.s32 %s95, 1
      %p99 = scmp.eq.s32.totalorder %s19, 1
      %p100 = scmp.ne.s32.totalorder %s95, %s97
      %p101 = scmp.eq.s32.totalorder %s19, 0
      %p102 = por %p100, %p101
      %p103 = scmp.ne.s32.totalorder %s95, %s97
      %p104 = scmp.eq.s32.totalorder %s24, 1
      %p105 = por %p103, %p104
      %p106 = scmp.ne.s32.totalorder %s97, %s98
      %p107 = scmp.eq.s32.totalorder %s24, 0
      %p108 = por %p106, %p107
      %p109 = scmp.ne.s32.totalorder %s97, %s98
      %p110 = scmp.eq.s32.totalorder %s25, 1
      %p111 = por %p109, %p110
      %p113 = scmp.ne.s32.totalorder %s98, %s112
      %p114 = scmp.eq.s32.totalorder %s25, 0
      %p115 = por %p113, %p114
      %s117 = sadd.s32 %s116, 1
      %p120 = scmp.eq.s32.totalorder %s19, 1
      %p121 = scmp.ne.s32.totalorder %s116, %s118
      %p122 = scmp.eq.s32.totalorder %s19, 0
      %p123 = por %p121, %p122
      %p124 = scmp.ne.s32.totalorder %s116, %s118
      %p125 = scmp.eq.s32.totalorder %s24, 1
      %p126 = por %p124, %p125
      %p127 = scmp.ne.s32.totalorder %s118, %s119
      %p128 = scmp.eq.s32.totalorder %s24, 0
      %p129 = por %p127, %p128
      %p130 = scmp.ne.s32.totalorder %s118, %s119
      %p131 = scmp.eq.s32.totalorder %s25, 1
      %p132 = por %p130, %p131
      %p134 = scmp.ne.s32.totalorder %s119, %s133
      %p135 = scmp.eq.s32.totalorder %s25, 0
      %p136 = por %p134, %p135
      %s137 = ssub.s32 %s19, %s26
      %p138 = scmp.eq.s32.totalorder %s137, 0
      %s140 = sadd.s32 %s139, 1
      %s141 = scalar_select %p138, %s139, %s140
      %p144 = pneg %p138
      %p145 = scmp.eq.s32.totalorder %s19, 1
      %p146 = por %p144, %p145
      %p147 = scmp.ne.s32.totalorder %s139, %s142
      %p148 = scmp.eq.s32.totalorder %s19, 0
      %p149 = por %p147, %p148
      %p150 = scmp.ne.s32.totalorder %s139, %s142
      %p151 = scmp.eq.s32.totalorder %s24, 1
      %p152 = por %p150, %p151
      %p153 = scmp.ne.s32.totalorder %s142, %s143
      %p154 = scmp.eq.s32.totalorder %s24, 0
      %p155 = por %p153, %p154
      %p156 = scmp.ne.s32.totalorder %s142, %s143
      %p157 = scmp.eq.s32.totalorder %s25, 1
      %p158 = por %p156, %p157
      %p160 = scmp.ne.s32.totalorder %s143, %s159
      %p161 = scmp.eq.s32.totalorder %s25, 0
      %p162 = por %p160, %p161
      %p163 = scmp.le.s32.totalorder 1, %s19
      %p164 = scmp.lt.s32.totalorder %s19, 3
      %p165 = pnand %p163, %p164
      %p166 = pneg %p165
      // Predicated region
      $region9: #{tpu_custom_call.1} parent=5 // pred_check
        _
      $region10: #{tpu_custom_call.1} parent=5 // pred_check_branch
        %168 = sbr.rel (%p165) target = $region12
      $region11: #{tpu_custom_call.1} parent=5 // pred_region
        %s169 = ssub.s32 %s19, 1
        // Predicated region
        $region13: #{tpu_custom_call.1} parent=11 // pred_check
          %p170 = pneg %p66
        $region14: #{tpu_custom_call.1} parent=11 // pred_check_branch
          %172 = sbr.rel (%p170) target = $region16
        $region15: #{tpu_custom_call.1} parent=11 // pred_region
          %s174 = ssub.s32 2816, 2816
          %175 = vsyncadd [#allocation8], %s174
          %s176 = sshll.u32 [#allocation7], 4
          %s177 = int_to_ptr.vmem [resolvable:$true] %s176
          %182 = dma.hbm_to_vmem [thread:$0]  %s1, 2816, %s177, [#allocation8], 128, 128, 8
        $region16: #{tpu_custom_call.1} parent=11 // pred_fallthru
          _
        // Predicated region
        $region17: #{tpu_custom_call.1} parent=11 // pred_check
          %p183 = pneg %p87
        $region18: #{tpu_custom_call.1} parent=11 // pred_check_branch
          %185 = sbr.rel (%p183) target = $region20
        $region19: #{tpu_custom_call.1} parent=11 // pred_region
          %s187 = ssub.s32 2816, 2816
          %188 = vsyncadd [#allocation8], %s187
          %s189 = sshll.u32 [#allocation9], 4
          %s190 = int_to_ptr.vmem [resolvable:$true] %s189
          %195 = dma.hbm_to_vmem [thread:$0]  %s2, 2816, %s190, [#allocation8], 128, 128, 8
        $region20: #{tpu_custom_call.1} parent=11 // pred_fallthru
          _
        // Predicated region
        $region21: #{tpu_custom_call.1} parent=11 // pred_check
          %p196 = pneg %p108
        $region22: #{tpu_custom_call.1} parent=11 // pred_check_branch
          %198 = sbr.rel (%p196) target = $region24
        $region23: #{tpu_custom_call.1} parent=11 // pred_region
          %s200 = ssub.s32 256, 256
          %201 = vsyncadd [#allocation11], %s200
          %s202 = sshll.u32 [#allocation10], 4
          %s203 = int_to_ptr.vmem [resolvable:$true] %s202
          %208 = dma.hbm_to_vmem [thread:$0]  %s3, 256, %s203, [#allocation11], 128, 128, 8
        $region24: #{tpu_custom_call.1} parent=11 // pred_fallthru
          _
        // Predicated region
        $region25: #{tpu_custom_call.1} parent=11 // pred_check
          %p209 = pneg %p129
        $region26: #{tpu_custom_call.1} parent=11 // pred_check_branch
          %211 = sbr.rel (%p209) target = $region28
        $region27: #{tpu_custom_call.1} parent=11 // pred_region
          %s213 = ssub.s32 256, 256
          %214 = vsyncadd [#allocation11], %s213
          %s215 = sshll.u32 [#allocation12], 4
          %s216 = int_to_ptr.vmem [resolvable:$true] %s215
          %221 = dma.hbm_to_vmem [thread:$0]  %s4, 256, %s216, [#allocation11], 128, 128, 8
        $region28: #{tpu_custom_call.1} parent=11 // pred_fallthru
          _
      $region12: #{tpu_custom_call.1} parent=5 // pred_fallthru
        _
      %p222 = scmp.lt.s32.totalorder %s19, 2
      // Predicated region
      $region29: #{tpu_custom_call.1} parent=5 // pred_check
        %p223 = pneg %p222
      $region30: #{tpu_custom_call.1} parent=5 // pred_check_branch
        %225 = sbr.rel (%p223) target = $region32
      $region31: #{tpu_custom_call.1} parent=5 // pred_region
        // Predicated region
        $region33: #{tpu_custom_call.1} parent=31 // pred_check
          %p226 = pneg %p39
        $region34: #{tpu_custom_call.1} parent=31 // pred_check_branch
          %228 = sbr.rel (%p226) target = $region36
        $region35: #{tpu_custom_call.1} parent=31 // pred_region
          %s229 = sand.u32 %s29, 1
          %s230 = scalar_lea.sflag [#allocation5], %s229
          %s231 = sand.u32 %s29, 1
          %s232 = smul.addr %s231, 64
          %s233 = scalar_lea.vmem [#allocation4], %s232
          %s235 = ssub.s32 1024, 1024
          %236 = vsyncadd %s230, %s235
          %s237 = smul.addr %s19, 8
          %s238 = smul.addr %s237, 128
          %s239 = scalar_lea.hbm %s0, %s238
          %s240 = sshll.u32 %s233, 4
          %s241 = int_to_ptr.vmem [resolvable:$true] %s240
          %246 = dma.hbm_to_vmem [thread:$0]  %s239, 1024, %s241, %s230, 128, 128, 8
        $region36: #{tpu_custom_call.1} parent=31 // pred_fallthru
          _
      $region32: #{tpu_custom_call.1} parent=5 // pred_fallthru
        _
      %p247 = scmp.le.s32.totalorder 1, %s19
      %p248 = scmp.lt.s32.totalorder %s19, 3
      %p249 = pnand %p247, %p248
      %p250 = pneg %p249
      // Predicated region
      $region37: #{tpu_custom_call.1} parent=5 // pred_check
        _
      $region38: #{tpu_custom_call.1} parent=5 // pred_check_branch
        %252 = sbr.rel (%p249) target = $region40
      $region39: #{tpu_custom_call.1} parent=5 // pred_region
        %s253 = ssub.s32 %s19, 1
        %s254 = sand.u32 %s32, 1
        %s255 = scalar_lea.sflag [#allocation5], %s254
        %s256 = sand.u32 %s32, 1
        %s257 = smul.addr %s256, 64
        %s258 = scalar_lea.vmem [#allocation4], %s257
        // Predicated region
        $region41: #{tpu_custom_call.1} parent=39 // pred_check
          %p259 = pneg %p45
        $region42: #{tpu_custom_call.1} parent=39 // pred_check_branch
          %261 = sbr.rel (%p259) target = $region44
        $region43: #{tpu_custom_call.1} parent=39 // pred_region
          %262 = dma.done %s255, 1024
        $region44: #{tpu_custom_call.1} parent=39 // pred_fallthru
          _
        // Predicated region
        $region45: #{tpu_custom_call.1} parent=39 // pred_check
          %p263 = pneg %p66
        $region46: #{tpu_custom_call.1} parent=39 // pred_check_branch
          %265 = sbr.rel (%p263) target = $region48
        $region47: #{tpu_custom_call.1} parent=39 // pred_region
          %266 = dma.done [#allocation8], 2816
        $region48: #{tpu_custom_call.1} parent=39 // pred_fallthru
          _
        // Predicated region
        $region49: #{tpu_custom_call.1} parent=39 // pred_check
          %p267 = pneg %p87
        $region50: #{tpu_custom_call.1} parent=39 // pred_check_branch
          %269 = sbr.rel (%p267) target = $region52
        $region51: #{tpu_custom_call.1} parent=39 // pred_region
          %270 = dma.done [#allocation8], 2816
        $region52: #{tpu_custom_call.1} parent=39 // pred_fallthru
          _
        // Predicated region
        $region53: #{tpu_custom_call.1} parent=39 // pred_check
          %p271 = pneg %p108
        $region54: #{tpu_custom_call.1} parent=39 // pred_check_branch
          %273 = sbr.rel (%p271) target = $region56
        $region55: #{tpu_custom_call.1} parent=39 // pred_region
          %274 = dma.done [#allocation11], 256
        $region56: #{tpu_custom_call.1} parent=39 // pred_fallthru
          _
        // Predicated region
        $region57: #{tpu_custom_call.1} parent=39 // pred_check
          %p275 = pneg %p129
        $region58: #{tpu_custom_call.1} parent=39 // pred_check_branch
          %277 = sbr.rel (%p275) target = $region60
        $region59: #{tpu_custom_call.1} parent=39 // pred_region
          %278 = dma.done [#allocation11], 256
        $region60: #{tpu_custom_call.1} parent=39 // pred_fallthru
          _
        %s279 = sand.u32 %s32, 1
        %s280 = scalar_lea.sflag [#allocation5], %s279
        %s281 = sand.u32 %s32, 1
        %s282 = smul.addr %s281, 64
        %s283 = scalar_lea.vmem [#allocation4], %s282
        %p284 = pneg %p45
        %p285 = pneg %p42
        %p286 = pneg %p66
        %p287 = pneg %p63
        %p288 = pneg %p87
        %p289 = pneg %p84
        %p290 = pneg %p108
        %p291 = pneg %p105
        %p292 = pneg %p129
        %p293 = pneg %p126
        %p294 = pneg %p155
        %p295 = pneg %p152
        %s296 = sand.u32 %s142, 1
        %s297 = scalar_lea.sflag [#allocation6], %s296
        %s298 = sand.u32 %s142, 1
        %s299 = smul.addr %s298, 64
        %s300 = scalar_lea.vmem [#allocation13], %s299
        %v301 = vld [vmem:[%s258] sm:$0xff]
        %v302 = vld [vmem:[%s258 + $0x8] sm:$0xff]
        %v303 = vld [vmem:[%s258 + $0x10] sm:$0xff]
        %v304 = vld [vmem:[%s258 + $0x18] sm:$0xff]
        %v305 = vld [vmem:[%s258 + $0x20] sm:$0xff]
        %v306 = vld [vmem:[%s258 + $0x28] sm:$0xff]
        %v307 = vld [vmem:[%s258 + $0x30] sm:$0xff]
        %v308 = vld [vmem:[%s258 + $0x38] sm:$0xff]
        %vm309 = vcmask 130048
        %v310 = vsel %vm309, %v301, 0.0
        %v311 = vsel %vm309, %v303, 0.0
        %v312 = vadd.f32 %v310, %v311
        %v313 = vsel %vm309, %v305, 0.0
        %v314 = vadd.f32 %v312, %v313
        %v315 = vsel %vm309, %v307, 0.0
        %v316 = vadd.f32 %v314, %v315
        %v317 = vsel %vm309, %v302, 0.0
        %v318 = vsel %vm309, %v304, 0.0
        %v319 = vadd.f32 %v317, %v318
        %v320 = vsel %vm309, %v306, 0.0
        %v321 = vadd.f32 %v319, %v320
        %v322 = vsel %vm309, %v308, 0.0
        %v323 = vadd.f32 %v321, %v322
        %v324 = vrcp.pop 4.0
        %v325 = vmul.f32 %v316, %v324
        %v326 = vmul.f32 %v323, %v324
        %v327 = vld [vmem:[#allocation10] sm:$0xff]
        %v328 = vld [vmem:[#allocation10 + $0x8] sm:$0xff]
        %v329 = vld [vmem:[#allocation12] sm:$0xff]
        %v330 = vld [vmem:[#allocation12 + $0x8] sm:$0xff]
        %331 = vst.msk [vmem:[#allocation2] sm:$0xff] %vm309, 0.0
        %332 = vst.msk [vmem:[#allocation2 + $0x8] sm:$0xff] %vm309, 0.0
        %333 = vst.msk [vmem:[#allocation2 + $0x10] sm:$0xff] %vm309, 0.0
        %334 = vst.msk [vmem:[#allocation2 + $0x18] sm:$0xff] %vm309, 0.0
        %335 = vst.msk [vmem:[#allocation2 + $0x20] sm:$0xff] %vm309, 0.0
        %336 = vst.msk [vmem:[#allocation2 + $0x28] sm:$0xff] %vm309, 0.0
        %337 = vst.msk [vmem:[#allocation2 + $0x30] sm:$0xff] %vm309, 0.0
        %338 = vst.msk [vmem:[#allocation2 + $0x38] sm:$0xff] %vm309, 0.0
        %339 = vst.msk [vmem:[#allocation3] sm:$0xff] %vm309, 0.0
        %340 = vst.msk [vmem:[#allocation3 + $0x8] sm:$0xff] %vm309, 0.0
        loop: start=0, step=1, limit=11
        $region61: #{tpu_custom_call.1} parent=39 // loop_pre_header
          _
        $region62: #{tpu_custom_call.1} parent=39 // loop_header
          %s342 = sphi 0, %s346
          %p343 = scmp.ge.s32.totalorder %s342, 11
        $region63: #{tpu_custom_call.1} parent=39 // loop_header_branch
          %345 = sbr.rel (%p343) target = $region67
        $region64: #{tpu_custom_call.1} parent=39 // loop_body
          %s347 = smul.u32 %s342, 16
          %s348 = scalar_lea.vmem [#allocation9], %s347
          %v349 = vld [vmem:[%s348] sm:$0xff]
          %v350 = vld [vmem:[%s348 + $0x8] sm:$0xff]
          %v352 = vsel %vm309, %v325, 0
          %v355 = vsel %vm309, %v326, 0
          %357 = vmatprep.subr.mxu0 0.0
          %358 = vmatpush1.msra.mxu0 %v349
          %359 = vmatprep.subr.mxu0 0.0
          %360 = vmatpush1.msra.mxu0 %v350
          %361 = vmatprep.subr.mxu0 0.0
          %362 = vmatpush1.msra.mxu0 0.0
          %363 = vmatprep.subr.mxu0 0.0
          %364 = vmatpush1.msra.mxu0 0.0
          %365 = vmatprep.subr.mxu0 0.0
          %366 = vmatpush1.msra.mxu0 0.0
          %367 = vmatprep.subr.mxu0 0.0
          %368 = vmatpush1.msra.mxu0 0.0
          %369 = vmatprep.subr.mxu0 0.0
          %370 = vmatpush1.msra.mxu0 0.0
          %371 = vmatprep.subr.mxu0 0.0
          %372 = vmatpush1.msra.mxu0 0.0
          %373 = vmatprep.subr.mxu0 0.0
          %374 = vmatpush1.msra.mxu0 0.0
          %375 = vmatprep.subr.mxu0 0.0
          %376 = vmatpush1.msra.mxu0 0.0
          %377 = vmatprep.subr.mxu0 0.0
          %378 = vmatpush1.msra.mxu0 0.0
          %379 = vmatprep.subr.mxu0 0.0
          %380 = vmatpush1.msra.mxu0 0.0
          %381 = vmatprep.subr.mxu0 0.0
          %382 = vmatpush1.msra.mxu0 0.0
          %383 = vmatprep.subr.mxu0 0.0
          %384 = vmatpush1.msra.mxu0 0.0
          %385 = vmatprep.subr.mxu0 0.0
          %386 = vmatpush1.msra.mxu0 0.0
          %387 = vmatprep.subr.mxu0 0.0
          %388 = vmatpush1.msra.mxu0 0.0
          %389 = vmatprep.subr.mxu0 0.0
          %390 = vmatpush1.msra.mxu0 0.0
          %391 = vmatprep.subr.mxu0 0.0
          %392 = vmatpush1.msra.mxu0 0.0
          %393 = vmatprep.subr.mxu0 0.0
          %394 = vmatpush1.msra.mxu0 0.0
          %395 = vmatprep.subr.mxu0 0.0
          %396 = vmatpush1.msra.mxu0 0.0
          %397 = vmatprep.subr.mxu0 0.0
          %398 = vmatpush1.msra.mxu0 0.0
          %399 = vmatprep.subr.mxu0 0.0
          %400 = vmatpush1.msra.mxu0 0.0
          %401 = vmatprep.subr.mxu0 0.0
          %402 = vmatpush1.msra.mxu0 0.0
          %403 = vmatprep.subr.mxu0 0.0
          %404 = vmatpush1.msra.mxu0 0.0
          %405 = vmatprep.subr.mxu0 0.0
          %406 = vmatpush1.msra.mxu0 0.0
          %407 = vmatprep.subr.mxu0 0.0
          %408 = vmatpush1.msra.mxu0 0.0
          %409 = vmatprep.subr.mxu0 0.0
          %410 = vmatpush1.msra.mxu0 0.0
          %411 = vmatprep.subr.mxu0 0.0
          %412 = vmatpush1.msra.mxu0 0.0
          %413 = vmatprep.subr.mxu0 0.0
          %414 = vmatpush1.msra.mxu0 0.0
          %415 = vmatprep.subr.mxu0 0.0
          %416 = vmatpush1.msra.mxu0 0.0
          %417 = vmatprep.subr.mxu0 0.0
          %418 = vmatpush1.msra.mxu0 0.0
          %419 = vmatprep.subr.mxu0 0.0
          %420 = vmatpush1.msra.mxu0 0.0
          %421 = vmatprep.mubr.f32.mxu0 0.0
          %422 = vmatmul.mubr.f32.gmra.mrb[0].mxu0 %v352
          %v423 = vpop.f32.mrb[0].mxu0
          %v424 = vadd.f32 0.0, %v423
          %v425 = vpop.f32.mrb[0].mxu0
          %426 = vmatprep.mubr.f32.mxu0 0.0
          %427 = vmatmul.mubr.f32.gmra.mrb[0].mxu0 %v355
          %v428 = vpop.f32.mrb[0].mxu0
          %v429 = vadd.f32 0.0, %v428
          %v430 = vpop.f32.mrb[0].mxu0
          %431 = vdwg.mxu0
          %v433 = vsel %vm309, %v301, 0
          %v436 = vsel %vm309, %v302, 0
          %438 = vmatprep.subr.mxu0 0.0
          %439 = vmatpush1.msra.mxu0 %v349
          %440 = vmatprep.subr.mxu0 0.0
          %441 = vmatpush1.msra.mxu0 %v350
          %442 = vmatprep.subr.mxu0 0.0
          %443 = vmatpush1.msra.mxu0 0.0
          %444 = vmatprep.subr.mxu0 0.0
          %445 = vmatpush1.msra.mxu0 0.0
          %446 = vmatprep.subr.mxu0 0.0
          %447 = vmatpush1.msra.mxu0 0.0
          %448 = vmatprep.subr.mxu0 0.0
          %449 = vmatpush1.msra.mxu0 0.0
          %450 = vmatprep.subr.mxu0 0.0
          %451 = vmatpush1.msra.mxu0 0.0
          %452 = vmatprep.subr.mxu0 0.0
          %453 = vmatpush1.msra.mxu0 0.0
          %454 = vmatprep.subr.mxu0 0.0
          %455 = vmatpush1.msra.mxu0 0.0
          %456 = vmatprep.subr.mxu0 0.0
          %457 = vmatpush1.msra.mxu0 0.0
          %458 = vmatprep.subr.mxu0 0.0
          %459 = vmatpush1.msra.mxu0 0.0
          %460 = vmatprep.subr.mxu0 0.0
          %461 = vmatpush1.msra.mxu0 0.0
          %462 = vmatprep.subr.mxu0 0.0
          %463 = vmatpush1.msra.mxu0 0.0
          %464 = vmatprep.subr.mxu0 0.0
          %465 = vmatpush1.msra.mxu0 0.0
          %466 = vmatprep.subr.mxu0 0.0
          %467 = vmatpush1.msra.mxu0 0.0
          %468 = vmatprep.subr.mxu0 0.0
          %469 = vmatpush1.msra.mxu0 0.0
          %470 = vmatprep.subr.mxu0 0.0
          %471 = vmatpush1.msra.mxu0 0.0
          %472 = vmatprep.subr.mxu0 0.0
          %473 = vmatpush1.msra.mxu0 0.0
          %474 = vmatprep.subr.mxu0 0.0
          %475 = vmatpush1.msra.mxu0 0.0
          %476 = vmatprep.subr.mxu0 0.0
          %477 = vmatpush1.msra.mxu0 0.0
          %478 = vmatprep.subr.mxu0 0.0
          %479 = vmatpush1.msra.mxu0 0.0
          %480 = vmatprep.subr.mxu0 0.0
          %481 = vmatpush1.msra.mxu0 0.0
          %482 = vmatprep.subr.mxu0 0.0
          %483 = vmatpush1.msra.mxu0 0.0
          %484 = vmatprep.subr.mxu0 0.0
          %485 = vmatpush1.msra.mxu0 0.0
          %486 = vmatprep.subr.mxu0 0.0
          %487 = vmatpush1.msra.mxu0 0.0
          %488 = vmatprep.subr.mxu0 0.0
          %489 = vmatpush1.msra.mxu0 0.0
          %490 = vmatprep.subr.mxu0 0.0
          %491 = vmatpush1.msra.mxu0 0.0
          %492 = vmatprep.subr.mxu0 0.0
          %493 = vmatpush1.msra.mxu0 0.0
          %494 = vmatprep.subr.mxu0 0.0
          %495 = vmatpush1.msra.mxu0 0.0
          %496 = vmatprep.subr.mxu0 0.0
          %497 = vmatpush1.msra.mxu0 0.0
          %498 = vmatprep.subr.mxu0 0.0
          %499 = vmatpush1.msra.mxu0 0.0
          %500 = vmatprep.subr.mxu0 0.0
          %501 = vmatpush1.msra.mxu0 0.0
          %502 = vmatprep.mubr.f32.mxu0 0.0
          %503 = vmatmul.mubr.f32.gmra.mrb[0].mxu0 %v433
          %v504 = vpop.f32.mrb[0].mxu0
          %v505 = vadd.f32 0.0, %v504
          %v506 = vpop.f32.mrb[0].mxu0
          %507 = vmatprep.mubr.f32.mxu0 0.0
          %508 = vmatmul.mubr.f32.gmra.mrb[0].mxu0 %v436
          %v509 = vpop.f32.mrb[0].mxu0
          %v510 = vadd.f32 0.0, %v509
          %v511 = vpop.f32.mrb[0].mxu0
          %512 = vdwg.mxu0
          %v514 = vsel %vm309, %v303, 0
          %v517 = vsel %vm309, %v304, 0
          %519 = vmatprep.subr.mxu0 0.0
          %520 = vmatpush1.msra.mxu0 %v349
          %521 = vmatprep.subr.mxu0 0.0
          %522 = vmatpush1.msra.mxu0 %v350
          %523 = vmatprep.subr.mxu0 0.0
          %524 = vmatpush1.msra.mxu0 0.0
          %525 = vmatprep.subr.mxu0 0.0
          %526 = vmatpush1.msra.mxu0 0.0
          %527 = vmatprep.subr.mxu0 0.0
          %528 = vmatpush1.msra.mxu0 0.0
          %529 = vmatprep.subr.mxu0 0.0
          %530 = vmatpush1.msra.mxu0 0.0
          %531 = vmatprep.subr.mxu0 0.0
          %532 = vmatpush1.msra.mxu0 0.0
          %533 = vmatprep.subr.mxu0 0.0
          %534 = vmatpush1.msra.mxu0 0.0
          %535 = vmatprep.subr.mxu0 0.0
          %536 = vmatpush1.msra.mxu0 0.0
          %537 = vmatprep.subr.mxu0 0.0
          %538 = vmatpush1.msra.mxu0 0.0
          %539 = vmatprep.subr.mxu0 0.0
          %540 = vmatpush1.msra.mxu0 0.0
          %541 = vmatprep.subr.mxu0 0.0
          %542 = vmatpush1.msra.mxu0 0.0
          %543 = vmatprep.subr.mxu0 0.0
          %544 = vmatpush1.msra.mxu0 0.0
          %545 = vmatprep.subr.mxu0 0.0
          %546 = vmatpush1.msra.mxu0 0.0
          %547 = vmatprep.subr.mxu0 0.0
          %548 = vmatpush1.msra.mxu0 0.0
          %549 = vmatprep.subr.mxu0 0.0
          %550 = vmatpush1.msra.mxu0 0.0
          %551 = vmatprep.subr.mxu0 0.0
          %552 = vmatpush1.msra.mxu0 0.0
          %553 = vmatprep.subr.mxu0 0.0
          %554 = vmatpush1.msra.mxu0 0.0
          %555 = vmatprep.subr.mxu0 0.0
          %556 = vmatpush1.msra.mxu0 0.0
          %557 = vmatprep.subr.mxu0 0.0
          %558 = vmatpush1.msra.mxu0 0.0
          %559 = vmatprep.subr.mxu0 0.0
          %560 = vmatpush1.msra.mxu0 0.0
          %561 = vmatprep.subr.mxu0 0.0
          %562 = vmatpush1.msra.mxu0 0.0
          %563 = vmatprep.subr.mxu0 0.0
          %564 = vmatpush1.msra.mxu0 0.0
          %565 = vmatprep.subr.mxu0 0.0
          %566 = vmatpush1.msra.mxu0 0.0
          %567 = vmatprep.subr.mxu0 0.0
          %568 = vmatpush1.msra.mxu0 0.0
          %569 = vmatprep.subr.mxu0 0.0
          %570 = vmatpush1.msra.mxu0 0.0
          %571 = vmatprep.subr.mxu0 0.0
          %572 = vmatpush1.msra.mxu0 0.0
          %573 = vmatprep.subr.mxu0 0.0
          %574 = vmatpush1.msra.mxu0 0.0
          %575 = vmatprep.subr.mxu0 0.0
          %576 = vmatpush1.msra.mxu0 0.0
          %577 = vmatprep.subr.mxu0 0.0
          %578 = vmatpush1.msra.mxu0 0.0
          %579 = vmatprep.subr.mxu0 0.0
          %580 = vmatpush1.msra.mxu0 0.0
          %581 = vmatprep.subr.mxu0 0.0
          %582 = vmatpush1.msra.mxu0 0.0
          %583 = vmatprep.mubr.f32.mxu0 0.0
          %584 = vmatmul.mubr.f32.gmra.mrb[0].mxu0 %v514
          %v585 = vpop.f32.mrb[0].mxu0
          %v586 = vadd.f32 0.0, %v585
          %v587 = vpop.f32.mrb[0].mxu0
          %588 = vmatprep.mubr.f32.mxu0 0.0
          %589 = vmatmul.mubr.f32.gmra.mrb[0].mxu0 %v517
          %v590 = vpop.f32.mrb[0].mxu0
          %v591 = vadd.f32 0.0, %v590
          %v592 = vpop.f32.mrb[0].mxu0
          %593 = vdwg.mxu0
          %v595 = vsel %vm309, %v305, 0
          %v598 = vsel %vm309, %v306, 0
          %600 = vmatprep.subr.mxu0 0.0
          %601 = vmatpush1.msra.mxu0 %v349
          %602 = vmatprep.subr.mxu0 0.0
          %603 = vmatpush1.msra.mxu0 %v350
          %604 = vmatprep.subr.mxu0 0.0
          %605 = vmatpush1.msra.mxu0 0.0
          %606 = vmatprep.subr.mxu0 0.0
          %607 = vmatpush1.msra.mxu0 0.0
          %608 = vmatprep.subr.mxu0 0.0
          %609 = vmatpush1.msra.mxu0 0.0
          %610 = vmatprep.subr.mxu0 0.0
          %611 = vmatpush1.msra.mxu0 0.0
          %612 = vmatprep.subr.mxu0 0.0
          %613 = vmatpush1.msra.mxu0 0.0
          %614 = vmatprep.subr.mxu0 0.0
          %615 = vmatpush1.msra.mxu0 0.0
          %616 = vmatprep.subr.mxu0 0.0
          %617 = vmatpush1.msra.mxu0 0.0
          %618 = vmatprep.subr.mxu0 0.0
          %619 = vmatpush1.msra.mxu0 0.0
          %620 = vmatprep.subr.mxu0 0.0
          %621 = vmatpush1.msra.mxu0 0.0
          %622 = vmatprep.subr.mxu0 0.0
          %623 = vmatpush1.msra.mxu0 0.0
          %624 = vmatprep.subr.mxu0 0.0
          %625 = vmatpush1.msra.mxu0 0.0
          %626 = vmatprep.subr.mxu0 0.0
          %627 = vmatpush1.msra.mxu0 0.0
          %628 = vmatprep.subr.mxu0 0.0
          %629 = vmatpush1.msra.mxu0 0.0
          %630 = vmatprep.subr.mxu0 0.0
          %631 = vmatpush1.msra.mxu0 0.0
          %632 = vmatprep.subr.mxu0 0.0
          %633 = vmatpush1.msra.mxu0 0.0
          %634 = vmatprep.subr.mxu0 0.0
          %635 = vmatpush1.msra.mxu0 0.0
          %636 = vmatprep.subr.mxu0 0.0
          %637 = vmatpush1.msra.mxu0 0.0
          %638 = vmatprep.subr.mxu0 0.0
          %639 = vmatpush1.msra.mxu0 0.0
          %640 = vmatprep.subr.mxu0 0.0
          %641 = vmatpush1.msra.mxu0 0.0
          %642 = vmatprep.subr.mxu0 0.0
          %643 = vmatpush1.msra.mxu0 0.0
          %644 = vmatprep.subr.mxu0 0.0
          %645 = vmatpush1.msra.mxu0 0.0
          %646 = vmatprep.subr.mxu0 0.0
          %647 = vmatpush1.msra.mxu0 0.0
          %648 = vmatprep.subr.mxu0 0.0
          %649 = vmatpush1.msra.mxu0 0.0
          %650 = vmatprep.subr.mxu0 0.0
          %651 = vmatpush1.msra.mxu0 0.0
          %652 = vmatprep.subr.mxu0 0.0
          %653 = vmatpush1.msra.mxu0 0.0
          %654 = vmatprep.subr.mxu0 0.0
          %655 = vmatpush1.msra.mxu0 0.0
          %656 = vmatprep.subr.mxu0 0.0
          %657 = vmatpush1.msra.mxu0 0.0
          %658 = vmatprep.subr.mxu0 0.0
          %659 = vmatpush1.msra.mxu0 0.0
          %660 = vmatprep.subr.mxu0 0.0
          %661 = vmatpush1.msra.mxu0 0.0
          %662 = vmatprep.subr.mxu0 0.0
          %663 = vmatpush1.msra.mxu0 0.0
          %664 = vmatprep.mubr.f32.mxu0 0.0
          %665 = vmatmul.mubr.f32.gmra.mrb[0].mxu0 %v595
          %v666 = vpop.f32.mrb[0].mxu0
          %v667 = vadd.f32 0.0, %v666
          %v668 = vpop.f32.mrb[0].mxu0
          %669 = vmatprep.mubr.f32.mxu0 0.0
          %670 = vmatmul.mubr.f32.gmra.mrb[0].mxu0 %v598
          %v671 = vpop.f32.mrb[0].mxu0
          %v672 = vadd.f32 0.0, %v671
          %v673 = vpop.f32.mrb[0].mxu0
          %674 = vdwg.mxu0
          %v676 = vsel %vm309, %v307, 0
          %v679 = vsel %vm309, %v308, 0
          %681 = vmatprep.subr.mxu0 0.0
          %682 = vmatpush1.msra.mxu0 %v349
          %683 = vmatprep.subr.mxu0 0.0
          %684 = vmatpush1.msra.mxu0 %v350
          %685 = vmatprep.subr.mxu0 0.0
          %686 = vmatpush1.msra.mxu0 0.0
          %687 = vmatprep.subr.mxu0 0.0
          %688 = vmatpush1.msra.mxu0 0.0
          %689 = vmatprep.subr.mxu0 0.0
          %690 = vmatpush1.msra.mxu0 0.0
          %691 = vmatprep.subr.mxu0 0.0
          %692 = vmatpush1.msra.mxu0 0.0
          %693 = vmatprep.subr.mxu0 0.0
          %694 = vmatpush1.msra.mxu0 0.0
          %695 = vmatprep.subr.mxu0 0.0
          %696 = vmatpush1.msra.mxu0 0.0
          %697 = vmatprep.subr.mxu0 0.0
          %698 = vmatpush1.msra.mxu0 0.0
          %699 = vmatprep.subr.mxu0 0.0
          %700 = vmatpush1.msra.mxu0 0.0
          %701 = vmatprep.subr.mxu0 0.0
          %702 = vmatpush1.msra.mxu0 0.0
          %703 = vmatprep.subr.mxu0 0.0
          %704 = vmatpush1.msra.mxu0 0.0
          %705 = vmatprep.subr.mxu0 0.0
          %706 = vmatpush1.msra.mxu0 0.0
          %707 = vmatprep.subr.mxu0 0.0
          %708 = vmatpush1.msra.mxu0 0.0
          %709 = vmatprep.subr.mxu0 0.0
          %710 = vmatpush1.msra.mxu0 0.0
          %711 = vmatprep.subr.mxu0 0.0
          %712 = vmatpush1.msra.mxu0 0.0
          %713 = vmatprep.subr.mxu0 0.0
          %714 = vmatpush1.msra.mxu0 0.0
          %715 = vmatprep.subr.mxu0 0.0
          %716 = vmatpush1.msra.mxu0 0.0
          %717 = vmatprep.subr.mxu0 0.0
          %718 = vmatpush1.msra.mxu0 0.0
          %719 = vmatprep.subr.mxu0 0.0
          %720 = vmatpush1.msra.mxu0 0.0
          %721 = vmatprep.subr.mxu0 0.0
          %722 = vmatpush1.msra.mxu0 0.0
          %723 = vmatprep.subr.mxu0 0.0
          %724 = vmatpush1.msra.mxu0 0.0
          %725 = vmatprep.subr.mxu0 0.0
          %726 = vmatpush1.msra.mxu0 0.0
          %727 = vmatprep.subr.mxu0 0.0
          %728 = vmatpush1.msra.mxu0 0.0
          %729 = vmatprep.subr.mxu0 0.0
          %730 = vmatpush1.msra.mxu0 0.0
          %731 = vmatprep.subr.mxu0 0.0
          %732 = vmatpush1.msra.mxu0 0.0
          %733 = vmatprep.subr.mxu0 0.0
          %734 = vmatpush1.msra.mxu0 0.0
          %735 = vmatprep.subr.mxu0 0.0
          %736 = vmatpush1.msra.mxu0 0.0
          %737 = vmatprep.subr.mxu0 0.0
          %738 = vmatpush1.msra.mxu0 0.0
          %739 = vmatprep.subr.mxu0 0.0
          %740 = vmatpush1.msra.mxu0 0.0
          %741 = vmatprep.subr.mxu0 0.0
          %742 = vmatpush1.msra.mxu0 0.0
          %743 = vmatprep.subr.mxu0 0.0
          %744 = vmatpush1.msra.mxu0 0.0
          %745 = vmatprep.mubr.f32.mxu0 0.0
          %746 = vmatmul.mubr.f32.gmra.mrb[0].mxu0 %v676
          %v747 = vpop.f32.mrb[0].mxu0
          %v748 = vadd.f32 0.0, %v747
          %v749 = vpop.f32.mrb[0].mxu0
          %750 = vmatprep.mubr.f32.mxu0 0.0
          %751 = vmatmul.mubr.f32.gmra.mrb[0].mxu0 %v679
          %v752 = vpop.f32.mrb[0].mxu0
          %v753 = vadd.f32 0.0, %v752
          %v754 = vpop.f32.mrb[0].mxu0
          %755 = vdwg.mxu0
          loop: start=0, step=1, limit=11
          $region68: #{tpu_custom_call.1} parent=64 // loop_pre_header
            _
          $region69: #{tpu_custom_call.1} parent=64 // loop_header
            %s757 = sphi 0, %s761
            %p758 = scmp.ge.s32.totalorder %s757, 11
          $region70: #{tpu_custom_call.1} parent=64 // loop_header_branch
            %760 = sbr.rel (%p758) target = $region74
          $region71: #{tpu_custom_call.1} parent=64 // loop_body
            %s762 = smul.u32 %s757, 16
            %s763 = scalar_lea.vmem [#allocation7], %s762
            %v764 = vld [vmem:[%s763] sm:$0xff]
            %v765 = vld [vmem:[%s763 + $0x8] sm:$0xff]
            %v767 = vsel %vm309, %v764, 0
            %v770 = vsel %vm309, %v765, 0
            %772 = vmatprep.subr.mxu0 0.0
            %773 = vmatpush1.msra.mxu0 %v424
            %774 = vmatprep.subr.mxu0 0.0
            %775 = vmatpush1.msra.mxu0 %v429
            %776 = vmatprep.subr.mxu0 0.0
            %777 = vmatpush1.msra.mxu0 0.0
            %778 = vmatprep.subr.mxu0 0.0
            %779 = vmatpush1.msra.mxu0 0.0
            %780 = vmatprep.subr.mxu0 0.0
            %781 = vmatpush1.msra.mxu0 0.0
            %782 = vmatprep.subr.mxu0 0.0
            %783 = vmatpush1.msra.mxu0 0.0
            %784 = vmatprep.subr.mxu0 0.0
            %785 = vmatpush1.msra.mxu0 0.0
            %786 = vmatprep.subr.mxu0 0.0
            %787 = vmatpush1.msra.mxu0 0.0
            %788 = vmatprep.subr.mxu0 0.0
            %789 = vmatpush1.msra.mxu0 0.0
            %790 = vmatprep.subr.mxu0 0.0
            %791 = vmatpush1.msra.mxu0 0.0
            %792 = vmatprep.subr.mxu0 0.0
            %793 = vmatpush1.msra.mxu0 0.0
            %794 = vmatprep.subr.mxu0 0.0
            %795 = vmatpush1.msra.mxu0 0.0
            %796 = vmatprep.subr.mxu0 0.0
            %797 = vmatpush1.msra.mxu0 0.0
            %798 = vmatprep.subr.mxu0 0.0
            %799 = vmatpush1.msra.mxu0 0.0
            %800 = vmatprep.subr.mxu0 0.0
            %801 = vmatpush1.msra.mxu0 0.0
            %802 = vmatprep.subr.mxu0 0.0
            %803 = vmatpush1.msra.mxu0 0.0
            %804 = vmatprep.subr.mxu0 0.0
            %805 = vmatpush1.msra.mxu0 0.0
            %806 = vmatprep.subr.mxu0 0.0
            %807 = vmatpush1.msra.mxu0 0.0
            %808 = vmatprep.subr.mxu0 0.0
            %809 = vmatpush1.msra.mxu0 0.0
            %810 = vmatprep.subr.mxu0 0.0
            %811 = vmatpush1.msra.mxu0 0.0
            %812 = vmatprep.subr.mxu0 0.0
            %813 = vmatpush1.msra.mxu0 0.0
            %814 = vmatprep.subr.mxu0 0.0
            %815 = vmatpush1.msra.mxu0 0.0
            %816 = vmatprep.subr.mxu0 0.0
            %817 = vmatpush1.msra.mxu0 0.0
            %818 = vmatprep.subr.mxu0 0.0
            %819 = vmatpush1.msra.mxu0 0.0
            %820 = vmatprep.subr.mxu0 0.0
            %821 = vmatpush1.msra.mxu0 0.0
            %822 = vmatprep.subr.mxu0 0.0
            %823 = vmatpush1.msra.mxu0 0.0
            %824 = vmatprep.subr.mxu0 0.0
            %825 = vmatpush1.msra.mxu0 0.0
            %826 = vmatprep.subr.mxu0 0.0
            %827 = vmatpush1.msra.mxu0 0.0
            %828 = vmatprep.subr.mxu0 0.0
            %829 = vmatpush1.msra.mxu0 0.0
            %830 = vmatprep.subr.mxu0 0.0
            %831 = vmatpush1.msra.mxu0 0.0
            %832 = vmatprep.subr.mxu0 0.0
            %833 = vmatpush1.msra.mxu0 0.0
            %834 = vmatprep.subr.mxu0 0.0
            %835 = vmatpush1.msra.mxu0 0.0
            %836 = vmatprep.mubr.f32.mxu0 0.0
            %837 = vmatmul.mubr.f32.gmra.mrb[0].mxu0 %v767
            %v838 = vpop.f32.mrb[0].mxu0
            %v839 = vadd.f32 0.0, %v838
            %v840 = vpop.f32.mrb[0].mxu0
            %841 = vmatprep.mubr.f32.mxu0 0.0
            %842 = vmatmul.mubr.f32.gmra.mrb[0].mxu0 %v770
            %v843 = vpop.f32.mrb[0].mxu0
            %v844 = vadd.f32 0.0, %v843
            %v845 = vpop.f32.mrb[0].mxu0
            %846 = vdwg.mxu0
            %v847 = vsub.f32 %v325, %v839
            %v848 = vsub.f32 %v326, %v844
            %v849 = vmul.f32 %v847, %v847
            %v850 = vmul.f32 %v848, %v848
            %v852 = vsel %vm309, %v849, 0
            %v855 = vsel %vm309, %v850, 0
            %857 = vmatprep.subr.mxu0 0.0
            %858 = vmatpush1.msra.mxu0 %v329
            %859 = vmatprep.subr.mxu0 0.0
            %860 = vmatpush1.msra.mxu0 %v330
            %861 = vmatprep.subr.mxu0 0.0
            %862 = vmatpush1.msra.mxu0 0.0
            %863 = vmatprep.subr.mxu0 0.0
            %864 = vmatpush1.msra.mxu0 0.0
            %865 = vmatprep.subr.mxu0 0.0
            %866 = vmatpush1.msra.mxu0 0.0
            %867 = vmatprep.subr.mxu0 0.0
            %868 = vmatpush1.msra.mxu0 0.0
            %869 = vmatprep.subr.mxu0 0.0
            %870 = vmatpush1.msra.mxu0 0.0
            %871 = vmatprep.subr.mxu0 0.0
            %872 = vmatpush1.msra.mxu0 0.0
            %873 = vmatprep.subr.mxu0 0.0
            %874 = vmatpush1.msra.mxu0 0.0
            %875 = vmatprep.subr.mxu0 0.0
            %876 = vmatpush1.msra.mxu0 0.0
            %877 = vmatprep.subr.mxu0 0.0
            %878 = vmatpush1.msra.mxu0 0.0
            %879 = vmatprep.subr.mxu0 0.0
            %880 = vmatpush1.msra.mxu0 0.0
            %881 = vmatprep.subr.mxu0 0.0
            %882 = vmatpush1.msra.mxu0 0.0
            %883 = vmatprep.subr.mxu0 0.0
            %884 = vmatpush1.msra.mxu0 0.0
            %885 = vmatprep.subr.mxu0 0.0
            %886 = vmatpush1.msra.mxu0 0.0
            %887 = vmatprep.subr.mxu0 0.0
            %888 = vmatpush1.msra.mxu0 0.0
            %889 = vmatprep.subr.mxu0 0.0
            %890 = vmatpush1.msra.mxu0 0.0
            %891 = vmatprep.subr.mxu0 0.0
            %892 = vmatpush1.msra.mxu0 0.0
            %893 = vmatprep.subr.mxu0 0.0
            %894 = vmatpush1.msra.mxu0 0.0
            %895 = vmatprep.subr.mxu0 0.0
            %896 = vmatpush1.msra.mxu0 0.0
            %897 = vmatprep.subr.mxu0 0.0
            %898 = vmatpush1.msra.mxu0 0.0
            %899 = vmatprep.subr.mxu0 0.0
            %900 = vmatpush1.msra.mxu0 0.0
            %901 = vmatprep.subr.mxu0 0.0
            %902 = vmatpush1.msra.mxu0 0.0
            %903 = vmatprep.subr.mxu0 0.0
            %904 = vmatpush1.msra.mxu0 0.0
            %905 = vmatprep.subr.mxu0 0.0
            %906 = vmatpush1.msra.mxu0 0.0
            %907 = vmatprep.subr.mxu0 0.0
            %908 = vmatpush1.msra.mxu0 0.0
            %909 = vmatprep.subr.mxu0 0.0
            %910 = vmatpush1.msra.mxu0 0.0
            %911 = vmatprep.subr.mxu0 0.0
            %912 = vmatpush1.msra.mxu0 0.0
            %913 = vmatprep.subr.mxu0 0.0
            %914 = vmatpush1.msra.mxu0 0.0
            %915 = vmatprep.subr.mxu0 0.0
            %916 = vmatpush1.msra.mxu0 0.0
            %917 = vmatprep.subr.mxu0 0.0
            %918 = vmatpush1.msra.mxu0 0.0
            %919 = vmatprep.subr.mxu0 0.0
            %920 = vmatpush1.msra.mxu0 0.0
            %921 = vmatprep.mubr.f32.mxu0 0.0
            %922 = vmatmul.mubr.f32.gmra.mrb[0].mxu0 %v852
            %v923 = vpop.f32.mrb[0].mxu0
            %v924 = vadd.f32 0.0, %v923
            %v925 = vpop.f32.mrb[0].mxu0
            %926 = vmatprep.mubr.f32.mxu0 0.0
            %927 = vmatmul.mubr.f32.gmra.mrb[0].mxu0 %v855
            %v928 = vpop.f32.mrb[0].mxu0
            %v929 = vadd.f32 0.0, %v928
            %v930 = vpop.f32.mrb[0].mxu0
            %931 = vdwg.mxu0
            %v933 = vsel %vm309, %v327, 0
            %v936 = vsel %vm309, %v328, 0
            %938 = vmatprep.subr.mxu0 0.0
            %939 = vmatpush1.msra.mxu0 %v924
            %940 = vmatprep.subr.mxu0 0.0
            %941 = vmatpush1.msra.mxu0 %v929
            %942 = vmatprep.subr.mxu0 0.0
            %943 = vmatpush1.msra.mxu0 0.0
            %944 = vmatprep.subr.mxu0 0.0
            %945 = vmatpush1.msra.mxu0 0.0
            %946 = vmatprep.subr.mxu0 0.0
            %947 = vmatpush1.msra.mxu0 0.0
            %948 = vmatprep.subr.mxu0 0.0
            %949 = vmatpush1.msra.mxu0 0.0
            %950 = vmatprep.subr.mxu0 0.0
            %951 = vmatpush1.msra.mxu0 0.0
            %952 = vmatprep.subr.mxu0 0.0
            %953 = vmatpush1.msra.mxu0 0.0
            %954 = vmatprep.subr.mxu0 0.0
            %955 = vmatpush1.msra.mxu0 0.0
            %956 = vmatprep.subr.mxu0 0.0
            %957 = vmatpush1.msra.mxu0 0.0
            %958 = vmatprep.subr.mxu0 0.0
            %959 = vmatpush1.msra.mxu0 0.0
            %960 = vmatprep.subr.mxu0 0.0
            %961 = vmatpush1.msra.mxu0 0.0
            %962 = vmatprep.subr.mxu0 0.0
            %963 = vmatpush1.msra.mxu0 0.0
            %964 = vmatprep.subr.mxu0 0.0
            %965 = vmatpush1.msra.mxu0 0.0
            %966 = vmatprep.subr.mxu0 0.0
            %967 = vmatpush1.msra.mxu0 0.0
            %968 = vmatprep.subr.mxu0 0.0
            %969 = vmatpush1.msra.mxu0 0.0
            %970 = vmatprep.subr.mxu0 0.0
            %971 = vmatpush1.msra.mxu0 0.0
            %972 = vmatprep.subr.mxu0 0.0
            %973 = vmatpush1.msra.mxu0 0.0
            %974 = vmatprep.subr.mxu0 0.0
            %975 = vmatpush1.msra.mxu0 0.0
            %976 = vmatprep.subr.mxu0 0.0
            %977 = vmatpush1.msra.mxu0 0.0
            %978 = vmatprep.subr.mxu0 0.0
            %979 = vmatpush1.msra.mxu0 0.0
            %980 = vmatprep.subr.mxu0 0.0
            %981 = vmatpush1.msra.mxu0 0.0
            %982 = vmatprep.subr.mxu0 0.0
            %983 = vmatpush1.msra.mxu0 0.0
            %984 = vmatprep.subr.mxu0 0.0
            %985 = vmatpush1.msra.mxu0 0.0
            %986 = vmatprep.subr.mxu0 0.0
            %987 = vmatpush1.msra.mxu0 0.0
            %988 = vmatprep.subr.mxu0 0.0
            %989 = vmatpush1.msra.mxu0 0.0
            %990 = vmatprep.subr.mxu0 0.0
            %991 = vmatpush1.msra.mxu0 0.0
            %992 = vmatprep.subr.mxu0 0.0
            %993 = vmatpush1.msra.mxu0 0.0
            %994 = vmatprep.subr.mxu0 0.0
            %995 = vmatpush1.msra.mxu0 0.0
            %996 = vmatprep.subr.mxu0 0.0
            %997 = vmatpush1.msra.mxu0 0.0
            %998 = vmatprep.subr.mxu0 0.0
            %999 = vmatpush1.msra.mxu0 0.0
            %1000 = vmatprep.subr.mxu0 0.0
            %1001 = vmatpush1.msra.mxu0 0.0
            %1002 = vmatprep.mubr.f32.mxu0 0.0
            %1003 = vmatmul.mubr.f32.gmra.mrb[0].mxu0 %v933
            %v1004 = vpop.f32.mrb[0].mxu0
            %v1005 = vadd.f32 0.0, %v1004
            %v1006 = vpop.f32.mrb[0].mxu0
            %1007 = vmatprep.mubr.f32.mxu0 0.0
            %1008 = vmatmul.mubr.f32.gmra.mrb[0].mxu0 %v936
            %v1009 = vpop.f32.mrb[0].mxu0
            %v1010 = vadd.f32 0.0, %v1009
            %v1011 = vpop.f32.mrb[0].mxu0
            %1012 = vdwg.mxu0
            %v1013 = vmax.f32 %v1005, 0.0
            %v1014 = vmax.f32 %v1010, 0.0
            %v1015 = vrsqrt.pop %v1013
            %v1016 = vmul.f32 %v1013, %v1015
            %vm1017 = vcmp.eq.f32.partialorder %v1013, inf
            %v1018 = vsel %vm1017, %v1013, %v1016
            %vm1019 = vcmp.eq.f32.partialorder %v1013, 0.0
            %v1020 = vand.u32 %v1013, 2147483648
            %v1021 = vsel %vm1019, %v1020, %v1018
            %v1022 = vrsqrt.pop %v1014
            %v1023 = vmul.f32 %v1014, %v1022
            %vm1024 = vcmp.eq.f32.partialorder %v1014, inf
            %v1025 = vsel %vm1024, %v1014, %v1023
            %vm1026 = vcmp.eq.f32.partialorder %v1014, 0.0
            %v1027 = vand.u32 %v1014, 2147483648
            %v1028 = vsel %vm1026, %v1027, %v1025
            %v1029 = vsub.f32 0.0, %v1021
            %v1030 = vsub.f32 0.0, %v1028
            %v1031 = vmul.f32 %v1029, 10.0
            %v1032 = vmul.f32 %v1030, 10.0
            %v1033 = vmul.f32 %v1031, 1.442695
            %v1034 = vpow.pop %v1033
            %v1035 = vmul.f32 %v1032, 1.442695
            %v1036 = vpow.pop %v1035
            %v1037 = vld [vmem:[#allocation3] sm:$0xff]
            %v1038 = vld [vmem:[#allocation3 + $0x8] sm:$0xff]
            %v1039 = vadd.f32 %v1037, %v1034
            %v1040 = vadd.f32 %v1038, %v1036
            %1041 = vst.msk [vmem:[#allocation3] sm:$0xff] %vm309, %v1039
            %1042 = vst.msk [vmem:[#allocation3 + $0x8] sm:$0xff] %vm309, %v1040
            %1043 = vmatprep.subr.mxu0 0.0
            %1044 = vmatpush1.msra.mxu0 %v505
            %1045 = vmatprep.subr.mxu0 0.0
            %1046 = vmatpush1.msra.mxu0 %v510
            %1047 = vmatprep.subr.mxu0 0.0
            %1048 = vmatpush1.msra.mxu0 0.0
            %1049 = vmatprep.subr.mxu0 0.0
            %1050 = vmatpush1.msra.mxu0 0.0
            %1051 = vmatprep.subr.mxu0 0.0
            %1052 = vmatpush1.msra.mxu0 0.0
            %1053 = vmatprep.subr.mxu0 0.0
            %1054 = vmatpush1.msra.mxu0 0.0
            %1055 = vmatprep.subr.mxu0 0.0
            %1056 = vmatpush1.msra.mxu0 0.0
            %1057 = vmatprep.subr.mxu0 0.0
            %1058 = vmatpush1.msra.mxu0 0.0
            %1059 = vmatprep.subr.mxu0 0.0
            %1060 = vmatpush1.msra.mxu0 0.0
            %1061 = vmatprep.subr.mxu0 0.0
            %1062 = vmatpush1.msra.mxu0 0.0
            %1063 = vmatprep.subr.mxu0 0.0
            %1064 = vmatpush1.msra.mxu0 0.0
            %1065 = vmatprep.subr.mxu0 0.0
            %1066 = vmatpush1.msra.mxu0 0.0
            %1067 = vmatprep.subr.mxu0 0.0
            %1068 = vmatpush1.msra.mxu0 0.0
            %1069 = vmatprep.subr.mxu0 0.0
            %1070 = vmatpush1.msra.mxu0 0.0
            %1071 = vmatprep.subr.mxu0 0.0
            %1072 = vmatpush1.msra.mxu0 0.0
            %1073 = vmatprep.subr.mxu0 0.0
            %1074 = vmatpush1.msra.mxu0 0.0
            %1075 = vmatprep.subr.mxu0 0.0
            %1076 = vmatpush1.msra.mxu0 0.0
            %1077 = vmatprep.subr.mxu0 0.0
            %1078 = vmatpush1.msra.mxu0 0.0
            %1079 = vmatprep.subr.mxu0 0.0
            %1080 = vmatpush1.msra.mxu0 0.0
            %1081 = vmatprep.subr.mxu0 0.0
            %1082 = vmatpush1.msra.mxu0 0.0
            %1083 = vmatprep.subr.mxu0 0.0
            %1084 = vmatpush1.msra.mxu0 0.0
            %1085 = vmatprep.subr.mxu0 0.0
            %1086 = vmatpush1.msra.mxu0 0.0
            %1087 = vmatprep.subr.mxu0 0.0
            %1088 = vmatpush1.msra.mxu0 0.0
            %1089 = vmatprep.subr.mxu0 0.0
            %1090 = vmatpush1.msra.mxu0 0.0
            %1091 = vmatprep.subr.mxu0 0.0
            %1092 = vmatpush1.msra.mxu0 0.0
            %1093 = vmatprep.subr.mxu0 0.0
            %1094 = vmatpush1.msra.mxu0 0.0
            %1095 = vmatprep.subr.mxu0 0.0
            %1096 = vmatpush1.msra.mxu0 0.0
            %1097 = vmatprep.subr.mxu0 0.0
            %1098 = vmatpush1.msra.mxu0 0.0
            %1099 = vmatprep.subr.mxu0 0.0
            %1100 = vmatpush1.msra.mxu0 0.0
            %1101 = vmatprep.subr.mxu0 0.0
            %1102 = vmatpush1.msra.mxu0 0.0
            %1103 = vmatprep.subr.mxu0 0.0
            %1104 = vmatpush1.msra.mxu0 0.0
            %1105 = vmatprep.subr.mxu0 0.0
            %1106 = vmatpush1.msra.mxu0 0.0
            %1107 = vmatprep.mubr.f32.mxu0 0.0
            %1108 = vmatmul.mubr.f32.gmra.mrb[0].mxu0 %v767
            %v1109 = vpop.f32.mrb[0].mxu0
            %v1110 = vadd.f32 0.0, %v1109
            %v1111 = vpop.f32.mrb[0].mxu0
            %1112 = vmatprep.mubr.f32.mxu0 0.0
            %1113 = vmatmul.mubr.f32.gmra.mrb[0].mxu0 %v770
            %v1114 = vpop.f32.mrb[0].mxu0
            %v1115 = vadd.f32 0.0, %v1114
            %v1116 = vpop.f32.mrb[0].mxu0
            %1117 = vdwg.mxu0
            %v1118 = vld [vmem:[#allocation2] sm:$0xff]
            %v1119 = vld [vmem:[#allocation2 + $0x8] sm:$0xff]
            %v1120 = vmul.f32 %v1034, %v1110
            %v1121 = vmul.f32 %v1036, %v1115
            %v1122 = vadd.f32 %v1118, %v1120
            %v1123 = vadd.f32 %v1119, %v1121
            %1124 = vst.msk [vmem:[#allocation2] sm:$0xff] %vm309, %v1122
            %1125 = vst.msk [vmem:[#allocation2 + $0x8] sm:$0xff] %vm309, %v1123
            %1126 = vmatprep.subr.mxu0 0.0
            %1127 = vmatpush1.msra.mxu0 %v586
            %1128 = vmatprep.subr.mxu0 0.0
            %1129 = vmatpush1.msra.mxu0 %v591
            %1130 = vmatprep.subr.mxu0 0.0
            %1131 = vmatpush1.msra.mxu0 0.0
            %1132 = vmatprep.subr.mxu0 0.0
            %1133 = vmatpush1.msra.mxu0 0.0
            %1134 = vmatprep.subr.mxu0 0.0
            %1135 = vmatpush1.msra.mxu0 0.0
            %1136 = vmatprep.subr.mxu0 0.0
            %1137 = vmatpush1.msra.mxu0 0.0
            %1138 = vmatprep.subr.mxu0 0.0
            %1139 = vmatpush1.msra.mxu0 0.0
            %1140 = vmatprep.subr.mxu0 0.0
            %1141 = vmatpush1.msra.mxu0 0.0
            %1142 = vmatprep.subr.mxu0 0.0
            %1143 = vmatpush1.msra.mxu0 0.0
            %1144 = vmatprep.subr.mxu0 0.0
            %1145 = vmatpush1.msra.mxu0 0.0
            %1146 = vmatprep.subr.mxu0 0.0
            %1147 = vmatpush1.msra.mxu0 0.0
            %1148 = vmatprep.subr.mxu0 0.0
            %1149 = vmatpush1.msra.mxu0 0.0
            %1150 = vmatprep.subr.mxu0 0.0
            %1151 = vmatpush1.msra.mxu0 0.0
            %1152 = vmatprep.subr.mxu0 0.0
            %1153 = vmatpush1.msra.mxu0 0.0
            %1154 = vmatprep.subr.mxu0 0.0
            %1155 = vmatpush1.msra.mxu0 0.0
            %1156 = vmatprep.subr.mxu0 0.0
            %1157 = vmatpush1.msra.mxu0 0.0
            %1158 = vmatprep.subr.mxu0 0.0
            %1159 = vmatpush1.msra.mxu0 0.0
            %1160 = vmatprep.subr.mxu0 0.0
            %1161 = vmatpush1.msra.mxu0 0.0
            %1162 = vmatprep.subr.mxu0 0.0
            %1163 = vmatpush1.msra.mxu0 0.0
            %1164 = vmatprep.subr.mxu0 0.0
            %1165 = vmatpush1.msra.mxu0 0.0
            %1166 = vmatprep.subr.mxu0 0.0
            %1167 = vmatpush1.msra.mxu0 0.0
            %1168 = vmatprep.subr.mxu0 0.0
            %1169 = vmatpush1.msra.mxu0 0.0
            %1170 = vmatprep.subr.mxu0 0.0
            %1171 = vmatpush1.msra.mxu0 0.0
            %1172 = vmatprep.subr.mxu0 0.0
            %1173 = vmatpush1.msra.mxu0 0.0
            %1174 = vmatprep.subr.mxu0 0.0
            %1175 = vmatpush1.msra.mxu0 0.0
            %1176 = vmatprep.subr.mxu0 0.0
            %1177 = vmatpush1.msra.mxu0 0.0
            %1178 = vmatprep.subr.mxu0 0.0
            %1179 = vmatpush1.msra.mxu0 0.0
            %1180 = vmatprep.subr.mxu0 0.0
            %1181 = vmatpush1.msra.mxu0 0.0
            %1182 = vmatprep.subr.mxu0 0.0
            %1183 = vmatpush1.msra.mxu0 0.0
            %1184 = vmatprep.subr.mxu0 0.0
            %1185 = vmatpush1.msra.mxu0 0.0
            %1186 = vmatprep.subr.mxu0 0.0
            %1187 = vmatpush1.msra.mxu0 0.0
            %1188 = vmatprep.subr.mxu0 0.0
            %1189 = vmatpush1.msra.mxu0 0.0
            %1190 = vmatprep.mubr.f32.mxu0 0.0
            %1191 = vmatmul.mubr.f32.gmra.mrb[0].mxu0 %v767
            %v1192 = vpop.f32.mrb[0].mxu0
            %v1193 = vadd.f32 0.0, %v1192
            %v1194 = vpop.f32.mrb[0].mxu0
            %1195 = vmatprep.mubr.f32.mxu0 0.0
            %1196 = vmatmul.mubr.f32.gmra.mrb[0].mxu0 %v770
            %v1197 = vpop.f32.mrb[0].mxu0
            %v1198 = vadd.f32 0.0, %v1197
            %v1199 = vpop.f32.mrb[0].mxu0
            %1200 = vdwg.mxu0
            %s1201 = scalar_lea.vmem [#allocation2], 16
            %v1202 = vld [vmem:[%s1201] sm:$0xff]
            %v1203 = vld [vmem:[%s1201 + $0x8] sm:$0xff]
            %v1204 = vmul.f32 %v1034, %v1193
            %v1205 = vmul.f32 %v1036, %v1198
            %v1206 = vadd.f32 %v1202, %v1204
            %v1207 = vadd.f32 %v1203, %v1205
            %1208 = vst.msk [vmem:[%s1201] sm:$0xff] %vm309, %v1206
            %1209 = vst.msk [vmem:[%s1201 + $0x8] sm:$0xff] %vm309, %v1207
            %1210 = vmatprep.subr.mxu0 0.0
            %1211 = vmatpush1.msra.mxu0 %v667
            %1212 = vmatprep.subr.mxu0 0.0
            %1213 = vmatpush1.msra.mxu0 %v672
            %1214 = vmatprep.subr.mxu0 0.0
            %1215 = vmatpush1.msra.mxu0 0.0
            %1216 = vmatprep.subr.mxu0 0.0
            %1217 = vmatpush1.msra.mxu0 0.0
            %1218 = vmatprep.subr.mxu0 0.0
            %1219 = vmatpush1.msra.mxu0 0.0
            %1220 = vmatprep.subr.mxu0 0.0
            %1221 = vmatpush1.msra.mxu0 0.0
            %1222 = vmatprep.subr.mxu0 0.0
            %1223 = vmatpush1.msra.mxu0 0.0
            %1224 = vmatprep.subr.mxu0 0.0
            %1225 = vmatpush1.msra.mxu0 0.0
            %1226 = vmatprep.subr.mxu0 0.0
            %1227 = vmatpush1.msra.mxu0 0.0
            %1228 = vmatprep.subr.mxu0 0.0
            %1229 = vmatpush1.msra.mxu0 0.0
            %1230 = vmatprep.subr.mxu0 0.0
            %1231 = vmatpush1.msra.mxu0 0.0
            %1232 = vmatprep.subr.mxu0 0.0
            %1233 = vmatpush1.msra.mxu0 0.0
            %1234 = vmatprep.subr.mxu0 0.0
            %1235 = vmatpush1.msra.mxu0 0.0
            %1236 = vmatprep.subr.mxu0 0.0
            %1237 = vmatpush1.msra.mxu0 0.0
            %1238 = vmatprep.subr.mxu0 0.0
            %1239 = vmatpush1.msra.mxu0 0.0
            %1240 = vmatprep.subr.mxu0 0.0
            %1241 = vmatpush1.msra.mxu0 0.0
            %1242 = vmatprep.subr.mxu0 0.0
            %1243 = vmatpush1.msra.mxu0 0.0
            %1244 = vmatprep.subr.mxu0 0.0
            %1245 = vmatpush1.msra.mxu0 0.0
            %1246 = vmatprep.subr.mxu0 0.0
            %1247 = vmatpush1.msra.mxu0 0.0
            %1248 = vmatprep.subr.mxu0 0.0
            %1249 = vmatpush1.msra.mxu0 0.0
            %1250 = vmatprep.subr.mxu0 0.0
            %1251 = vmatpush1.msra.mxu0 0.0
            %1252 = vmatprep.subr.mxu0 0.0
            %1253 = vmatpush1.msra.mxu0 0.0
            %1254 = vmatprep.subr.mxu0 0.0
            %1255 = vmatpush1.msra.mxu0 0.0
            %1256 = vmatprep.subr.mxu0 0.0
            %1257 = vmatpush1.msra.mxu0 0.0
            %1258 = vmatprep.subr.mxu0 0.0
            %1259 = vmatpush1.msra.mxu0 0.0
            %1260 = vmatprep.subr.mxu0 0.0
            %1261 = vmatpush1.msra.mxu0 0.0
            %1262 = vmatprep.subr.mxu0 0.0
            %1263 = vmatpush1.msra.mxu0 0.0
            %1264 = vmatprep.subr.mxu0 0.0
            %1265 = vmatpush1.msra.mxu0 0.0
            %1266 = vmatprep.subr.mxu0 0.0
            %1267 = vmatpush1.msra.mxu0 0.0
            %1268 = vmatprep.subr.mxu0 0.0
            %1269 = vmatpush1.msra.mxu0 0.0
            %1270 = vmatprep.subr.mxu0 0.0
            %1271 = vmatpush1.msra.mxu0 0.0
            %1272 = vmatprep.subr.mxu0 0.0
            %1273 = vmatpush1.msra.mxu0 0.0
            %1274 = vmatprep.mubr.f32.mxu0 0.0
            %1275 = vmatmul.mubr.f32.gmra.mrb[0].mxu0 %v767
            %v1276 = vpop.f32.mrb[0].mxu0
            %v1277 = vadd.f32 0.0, %v1276
            %v1278 = vpop.f32.mrb[0].mxu0
            %1279 = vmatprep.mubr.f32.mxu0 0.0
            %1280 = vmatmul.mubr.f32.gmra.mrb[0].mxu0 %v770
            %v1281 = vpop.f32.mrb[0].mxu0
            %v1282 = vadd.f32 0.0, %v1281
            %v1283 = vpop.f32.mrb[0].mxu0
            %1284 = vdwg.mxu0
            %s1285 = scalar_lea.vmem [#allocation2], 32
            %v1286 = vld [vmem:[%s1285] sm:$0xff]
            %v1287 = vld [vmem:[%s1285 + $0x8] sm:$0xff]
            %v1288 = vmul.f32 %v1034, %v1277
            %v1289 = vmul.f32 %v1036, %v1282
            %v1290 = vadd.f32 %v1286, %v1288
            %v1291 = vadd.f32 %v1287, %v1289
            %1292 = vst.msk [vmem:[%s1285] sm:$0xff] %vm309, %v1290
            %1293 = vst.msk [vmem:[%s1285 + $0x8] sm:$0xff] %vm309, %v1291
            %1294 = vmatprep.subr.mxu0 0.0
            %1295 = vmatpush1.msra.mxu0 %v748
            %1296 = vmatprep.subr.mxu0 0.0
            %1297 = vmatpush1.msra.mxu0 %v753
            %1298 = vmatprep.subr.mxu0 0.0
            %1299 = vmatpush1.msra.mxu0 0.0
            %1300 = vmatprep.subr.mxu0 0.0
            %1301 = vmatpush1.msra.mxu0 0.0
            %1302 = vmatprep.subr.mxu0 0.0
            %1303 = vmatpush1.msra.mxu0 0.0
            %1304 = vmatprep.subr.mxu0 0.0
            %1305 = vmatpush1.msra.mxu0 0.0
            %1306 = vmatprep.subr.mxu0 0.0
            %1307 = vmatpush1.msra.mxu0 0.0
            %1308 = vmatprep.subr.mxu0 0.0
            %1309 = vmatpush1.msra.mxu0 0.0
            %1310 = vmatprep.subr.mxu0 0.0
            %1311 = vmatpush1.msra.mxu0 0.0
            %1312 = vmatprep.subr.mxu0 0.0
            %1313 = vmatpush1.msra.mxu0 0.0
            %1314 = vmatprep.subr.mxu0 0.0
            %1315 = vmatpush1.msra.mxu0 0.0
            %1316 = vmatprep.subr.mxu0 0.0
            %1317 = vmatpush1.msra.mxu0 0.0
            %1318 = vmatprep.subr.mxu0 0.0
            %1319 = vmatpush1.msra.mxu0 0.0
            %1320 = vmatprep.subr.mxu0 0.0
            %1321 = vmatpush1.msra.mxu0 0.0
            %1322 = vmatprep.subr.mxu0 0.0
            %1323 = vmatpush1.msra.mxu0 0.0
            %1324 = vmatprep.subr.mxu0 0.0
            %1325 = vmatpush1.msra.mxu0 0.0
            %1326 = vmatprep.subr.mxu0 0.0
            %1327 = vmatpush1.msra.mxu0 0.0
            %1328 = vmatprep.subr.mxu0 0.0
            %1329 = vmatpush1.msra.mxu0 0.0
            %1330 = vmatprep.subr.mxu0 0.0
            %1331 = vmatpush1.msra.mxu0 0.0
            %1332 = vmatprep.subr.mxu0 0.0
            %1333 = vmatpush1.msra.mxu0 0.0
            %1334 = vmatprep.subr.mxu0 0.0
            %1335 = vmatpush1.msra.mxu0 0.0
            %1336 = vmatprep.subr.mxu0 0.0
            %1337 = vmatpush1.msra.mxu0 0.0
            %1338 = vmatprep.subr.mxu0 0.0
            %1339 = vmatpush1.msra.mxu0 0.0
            %1340 = vmatprep.subr.mxu0 0.0
            %1341 = vmatpush1.msra.mxu0 0.0
            %1342 = vmatprep.subr.mxu0 0.0
            %1343 = vmatpush1.msra.mxu0 0.0
            %1344 = vmatprep.subr.mxu0 0.0
            %1345 = vmatpush1.msra.mxu0 0.0
            %1346 = vmatprep.subr.mxu0 0.0
            %1347 = vmatpush1.msra.mxu0 0.0
            %1348 = vmatprep.subr.mxu0 0.0
            %1349 = vmatpush1.msra.mxu0 0.0
            %1350 = vmatprep.subr.mxu0 0.0
            %1351 = vmatpush1.msra.mxu0 0.0
            %1352 = vmatprep.subr.mxu0 0.0
            %1353 = vmatpush1.msra.mxu0 0.0
            %1354 = vmatprep.subr.mxu0 0.0
            %1355 = vmatpush1.msra.mxu0 0.0
            %1356 = vmatprep.subr.mxu0 0.0
            %1357 = vmatpush1.msra.mxu0 0.0
            %1358 = vmatprep.mubr.f32.mxu0 0.0
            %1359 = vmatmul.mubr.f32.gmra.mrb[0].mxu0 %v767
            %v1360 = vpop.f32.mrb[0].mxu0
            %v1361 = vadd.f32 0.0, %v1360
            %v1362 = vpop.f32.mrb[0].mxu0
            %1363 = vmatprep.mubr.f32.mxu0 0.0
            %1364 = vmatmul.mubr.f32.gmra.mrb[0].mxu0 %v770
            %v1365 = vpop.f32.mrb[0].mxu0
            %v1366 = vadd.f32 0.0, %v1365
            %v1367 = vpop.f32.mrb[0].mxu0
            %1368 = vdwg.mxu0
            %s1369 = scalar_lea.vmem [#allocation2], 48
            %v1370 = vld [vmem:[%s1369] sm:$0xff]
            %v1371 = vld [vmem:[%s1369 + $0x8] sm:$0xff]
            %v1372 = vmul.f32 %v1034, %v1361
            %v1373 = vmul.f32 %v1036, %v1366
            %v1374 = vadd.f32 %v1370, %v1372
            %v1375 = vadd.f32 %v1371, %v1373
            %1376 = vst.msk [vmem:[%s1369] sm:$0xff] %vm309, %v1374
            %1377 = vst.msk [vmem:[%s1369 + $0x8] sm:$0xff] %vm309, %v1375
          $region72: #{tpu_custom_call.1} parent=64 // loop_footer
            %s761 = sadd.s32 1, %s757
          $region73: #{tpu_custom_call.1} parent=64 // loop_footer_branch
            %756 = sbr.rel target = $region69
          $region74: #{tpu_custom_call.1} parent=64 // loop_exit
            _
        $region65: #{tpu_custom_call.1} parent=39 // loop_footer
          %s346 = sadd.s32 1, %s342
        $region66: #{tpu_custom_call.1} parent=39 // loop_footer_branch
          %341 = sbr.rel target = $region62
        $region67: #{tpu_custom_call.1} parent=39 // loop_exit
          _
        %v1378 = vld [vmem:[#allocation3] sm:$0xff]
        %v1379 = vld [vmem:[#allocation3 + $0x8] sm:$0xff]
        %v1380 = vrcp.pop %v1378
        %v1381 = vrcp.pop %v1379
        %v1382 = vld [vmem:[#allocation2] sm:$0xff]
        %v1383 = vld [vmem:[#allocation2 + $0x8] sm:$0xff]
        %v1384 = vld [vmem:[#allocation2 + $0x10] sm:$0xff]
        %v1385 = vld [vmem:[#allocation2 + $0x18] sm:$0xff]
        %v1386 = vld [vmem:[#allocation2 + $0x20] sm:$0xff]
        %v1387 = vld [vmem:[#allocation2 + $0x28] sm:$0xff]
        %v1388 = vld [vmem:[#allocation2 + $0x30] sm:$0xff]
        %v1389 = vld [vmem:[#allocation2 + $0x38] sm:$0xff]
        %v1390 = vmul.f32 %v1382, %v1380
        %v1391 = vmul.f32 %v1383, %v1381
        %v1392 = vmul.f32 %v1384, %v1380
        %v1393 = vmul.f32 %v1385, %v1381
        %v1394 = vmul.f32 %v1386, %v1380
        %v1395 = vmul.f32 %v1387, %v1381
        %v1396 = vmul.f32 %v1388, %v1380
        %v1397 = vmul.f32 %v1389, %v1381
        %v1398 = vmax.f32 %v1390, 0.0
        %v1399 = vmax.f32 %v1391, 0.0
        %v1400 = vmax.f32 %v1392, 0.0
        %v1401 = vmax.f32 %v1393, 0.0
        %v1402 = vmax.f32 %v1394, 0.0
        %v1403 = vmax.f32 %v1395, 0.0
        %v1404 = vmax.f32 %v1396, 0.0
        %v1405 = vmax.f32 %v1397, 0.0
        %v1406 = vmin.f32 %v1398, 1.0
        %v1407 = vmin.f32 %v1399, 1.0
        %v1408 = vmin.f32 %v1400, 1.0
        %v1409 = vmin.f32 %v1401, 1.0
        %v1410 = vmin.f32 %v1402, 1.0
        %v1411 = vmin.f32 %v1403, 1.0
        %v1412 = vmin.f32 %v1404, 1.0
        %v1413 = vmin.f32 %v1405, 1.0
        %1414 = vst.msk [vmem:[%s300] sm:$0xff] %vm309, %v1406
        %1415 = vst.msk [vmem:[%s300 + $0x8] sm:$0xff] %vm309, %v1407
        %1416 = vst.msk [vmem:[%s300 + $0x10] sm:$0xff] %vm309, %v1408
        %1417 = vst.msk [vmem:[%s300 + $0x18] sm:$0xff] %vm309, %v1409
        %1418 = vst.msk [vmem:[%s300 + $0x20] sm:$0xff] %vm309, %v1410
        %1419 = vst.msk [vmem:[%s300 + $0x28] sm:$0xff] %vm309, %v1411
        %1420 = vst.msk [vmem:[%s300 + $0x30] sm:$0xff] %vm309, %v1412
        %1421 = vst.msk [vmem:[%s300 + $0x38] sm:$0xff] %vm309, %v1413
        %s1422 = sand.u32 %s142, 1
        %s1423 = scalar_lea.sflag [#allocation6], %s1422
        %s1424 = sand.u32 %s142, 1
        %s1425 = smul.addr %s1424, 64
        %s1426 = scalar_lea.vmem [#allocation13], %s1425
        // Predicated region
        $region75: #{tpu_custom_call.1} parent=39 // pred_check
          %p1427 = pneg %p152
        $region76: #{tpu_custom_call.1} parent=39 // pred_check_branch
          %1429 = sbr.rel (%p1427) target = $region78
        $region77: #{tpu_custom_call.1} parent=39 // pred_region
          %s1431 = ssub.s32 1024, 1024
          %1432 = vsyncadd %s1423, %s1431
          %s1433 = smul.addr %s24, 8
          %s1434 = smul.addr %s1433, 128
          %s1435 = scalar_lea.hbm %s5, %s1434
          %s1436 = sshll.u32 %s1426, 4
          %s1437 = int_to_ptr.vmem [resolvable:$true] %s1436
          %1442 = dma.vmem_to_hbm [thread:$0]  %s1437, 1024, %s1435, %s1423, 128, 128, 8
        $region78: #{tpu_custom_call.1} parent=39 // pred_fallthru
          _
      $region40: #{tpu_custom_call.1} parent=5 // pred_fallthru
        _
      %p1443 = scmp.le.s32.totalorder 2, %s19
      // Predicated region
      $region79: #{tpu_custom_call.1} parent=5 // pred_check
        %p1444 = pneg %p1443
      $region80: #{tpu_custom_call.1} parent=5 // pred_check_branch
        %1446 = sbr.rel (%p1444) target = $region82
      $region81: #{tpu_custom_call.1} parent=5 // pred_region
        %s1447 = ssub.s32 %s19, 2
        // Predicated region
        $region83: #{tpu_custom_call.1} parent=81 // pred_check
          %p1448 = pneg %p158
        $region84: #{tpu_custom_call.1} parent=81 // pred_check_branch
          %1450 = sbr.rel (%p1448) target = $region86
        $region85: #{tpu_custom_call.1} parent=81 // pred_region
          %s1451 = sand.u32 %s143, 1
          %s1452 = scalar_lea.sflag [#allocation6], %s1451
          %s1453 = sand.u32 %s143, 1
          %s1454 = smul.addr %s1453, 64
          %s1455 = scalar_lea.vmem [#allocation13], %s1454
          %1456 = dma.done %s1452, 1024
        $region86: #{tpu_custom_call.1} parent=81 // pred_fallthru
          _
      $region82: #{tpu_custom_call.1} parent=5 // pred_fallthru
        _
    $region6: #{tpu_custom_call.1} parent=1 // loop_footer
      %s23 = sadd.s32 1, %s19
    $region7: #{tpu_custom_call.1} parent=1 // loop_footer_branch
      %18 = sbr.rel target = $region3
    $region8: #{tpu_custom_call.1} parent=1 // loop_exit
      _
    %1457 = vsyncpa [#allocation5], 1
    %s1458 = scalar_lea.sflag [#allocation5], 1
    %1459 = vsyncpa %s1458, 1
    %1460 = vsyncpa [#allocation8], 1
    %1461 = vsyncpa [#allocation11], 1
    %1462 = vsyncpa [#allocation6], 1
    %s1463 = scalar_lea.sflag [#allocation6], 1
    %1464 = vsyncpa %s1463, 1

</llo_original>
